<compile_context>
chip_gen: v5e
topology: v5e:2x2
jax: 0.10.0
libtpu: 0.0.40
codegen_flags: <defaults>
</compile_context>

<pallas_src>
import functools

import jax
import jax.numpy as jnp
import numpy as np
from jax import lax
from jax.experimental import pallas as pl
from jax.experimental.pallas import tpu as pltpu


# ----------------------------------------------------------------------------
# Kernel
# ----------------------------------------------------------------------------
def _fused_block_kernel(x_ref, w1_ref, b1_ref, w2_ref, b2_ref, idx_ref, o_ref,
                        *, wp, p1, p2s, ksize, W, H, th):
    """Fused (conv 'same' -> LeakyReLU) x2 on one (batch, row-tile) slab.

    x_ref  : (Cin, NR)        channel-major, zero-padded, flattened input slab
    w1_ref : (k*k, Cout, Cin) conv1 taps
    b1_ref : (Cout, 1)
    w2_ref : (k*k, Cout, Cout) conv2 taps
    b2_ref : (Cout, 1)
    idx_ref: (2, P1) int32    static [row, col] decomposition of y1 positions
    o_ref  : (Cout, P2S)      channel-major output tile (lane-dense store)
    """
    pad = ksize // 2
    k2 = ksize * ksize

    # ---- conv1: k*k accumulating MXU dots, spatial on the lane axis --------
    acc1 = None
    for kk in range(k2):
        off = (kk // ksize) * wp + (kk % ksize)
        d = jnp.dot(w1_ref[kk], x_ref[:, off:off + p1],
                    preferred_element_type=jnp.float32)
        acc1 = d if acc1 is None else acc1 + d
    acc1 = acc1 + b1_ref[...].astype(jnp.float32)
    y1 = jnp.maximum(acc1, 0.2 * acc1)                     # LeakyReLU(0.2)

    # conv2's 'same' zero padding requires conv1's output to be exactly zero
    # outside the true HxW image -> mask the halo ring.  Row/col indices are a
    # tiny resident int32 array; only the tile row offset is dynamic.
    row0 = pl.program_id(1) * th
    img_row = idx_ref[0:1, :] + (row0 - pad)               # (1, P1)
    col = idx_ref[1:2, :]
    keep = (col >= pad) & (col < W + pad) & (img_row >= 0) & (img_row < H)
    y1 = jnp.where(keep, y1, 0.0).astype(w2_ref.dtype)

    # ---- conv2: consumes y1 straight from VMEM/vregs (no HBM round trip) ---
    acc2 = None
    for kk in range(k2):
        off = (kk // ksize) * wp + (kk % ksize)
        d = jnp.dot(w2_ref[kk], y1[:, off:off + p2s],
                    preferred_element_type=jnp.float32)
        acc2 = d if acc2 is None else acc2 + d
    acc2 = acc2 + b2_ref[...].astype(jnp.float32)
    y2 = jnp.maximum(acc2, 0.2 * acc2)

    # accumulator is already channel-major -> straight, 128-aligned store.
    o_ref[...] = y2.astype(o_ref.dtype)


# ----------------------------------------------------------------------------
# Tiling / VMEM bookkeeping
# ----------------------------------------------------------------------------
def _round_up(x, m):
    return (x + m - 1) // m * m


def _vmem_budget_bytes():
    """Generation-aware (tile budget, scoped vmem limit)."""
    cap = 64 * 1024 * 1024                       # conservative default (v7x)
    try:
        info = pltpu.get_tpu_info()
        cap = int(getattr(info, "vmem_capacity_bytes", cap))
    except Exception:
        pass
    tile_budget = min(cap // 3, 48 * 1024 * 1024)      # ~21 MiB v7x, ~42 MiB v5e/v6e
    vmem_limit = min((cap * 3) // 4, 100 * 1024 * 1024)
    return tile_budget, vmem_limit


def _footprint_bytes(th, W, cin, cout, ksize, itemsize):
    """(8,128)-tiling-aware per-grid-step VMEM estimate for a th-row tile."""
    p = ksize // 2
    wp = W + 4 * p
    p2s = _round_up(th * wp, 128)
    p1 = 2 * p * wp + 2 * p + p2s
    nr = _round_up(2 * p * wp + 2 * p + p1, wp)
    cin8, cout8 = _round_up(cin, 8), _round_up(cout, 8)
    est = 0
    est += 2 * cin8 * _round_up(nr, 128) * itemsize                 # input slab (2 bufs)
    est += 2 * cout8 * p2s * itemsize                               # output tile (2 bufs)
    est += 2 * ksize * ksize * cout8 * (_round_up(cin, 128) + _round_up(cout, 128)) * itemsize
    est += 4 * cout8 * 128 * 4                                      # biases
    est += 2 * 8 * _round_up(p1, 128) * 4                           # idx array (int32)
    est += 3 * cout8 * _round_up(p1, 128) * 4                       # acc1 / y1 / acc2 temps
    return est


def _pick_tile_rows(H, W, cin, cout, ksize, itemsize, budget, want_split):
    divs = sorted((d for d in range(1, H + 1) if H % d == 0), reverse=True)
    if want_split and len(divs) > 1:
        # v7x has 2 TensorCores: prefer >= 2 parallel grid steps when batch==1.
        divs = [d for d in divs if d < H] + [H]
    for th in divs:
        if _footprint_bytes(th, W, cin, cout, ksize, itemsize) <= budget:
            return th
    return 1


# ----------------------------------------------------------------------------
# Wrapper
# ----------------------------------------------------------------------------
def block_forward(params, x_nchw, *, tile_rows=None):
    """Forward of `Block` (NCHW in / NCHW out), fused into one pallas_call."""
    w1, b1, w2, b2 = params["w1"], params["b1"], params["w2"], params["b2"]
    ksize = w1.shape[0]
    assert ksize % 2 == 1, "only odd kernel sizes ('same') are supported"
    p = ksize // 2
    k2 = ksize * ksize

    N, Cin, H, W = x_nchw.shape
    Cout = w1.shape[3]
    dtype = x_nchw.dtype
    itemsize = jnp.dtype(dtype).itemsize

    tile_budget, vmem_limit = _vmem_budget_bytes()
    if tile_rows is None:
        th = _pick_tile_rows(H, W, Cin, Cout, ksize, itemsize, tile_budget,
                             want_split=(N == 1))
    else:
        th = int(tile_rows)
    assert H % th == 0, "tile_rows must divide H"
    T = H // th

    # Flat-slab geometry (all in "padded-width" coordinates).
    wp = W + 4 * p                               # 2p halo each side
    p2 = th * wp                                 # real flat extent of the tile's output
    p2s = _round_up(p2, 128)                     # stored extent: lane-aligned -> unmasked vst
    p1 = 2 * p * wp + 2 * p + p2s                # flat extent of the halo'd conv1 output
    nr = _round_up(2 * p * wp + 2 * p + p1, wp)  # slab extent (whole rows)
    rows_slab = nr // wp
    rows_total = (T - 1) * th + rows_slab

    # Channel-major (== NCHW) zero-padded input; flat spatial goes on lanes.
    xp = jnp.pad(x_nchw, ((0, 0), (0, 0),
                          (2 * p, rows_total - H - 2 * p),
                          (2 * p, 2 * p)))
    if T == 1:
        # Whole image per grid step: pure pad+reshape, no duplicated halo rows
        # and no extra HBM round trip.
        slabs = xp.reshape(N, 1, Cin, nr)
    else:
        # TODO(synk): fetch overlapping row windows in-kernel (pl.Element /
        # manual DMA) instead of materializing them; with the large row tiles
        # the auto-picker uses, the duplicated-halo overhead here is only
        # (rows_slab - th)/rows_slab of the input traffic.
        slabs = jnp.stack([xp[:, :, t * th:t * th + rows_slab] for t in range(T)],
                          axis=1)
        slabs = slabs.reshape(N, T, Cin, nr)

    # Weights per tap as (Cout, Cin) so the dot output is already channel-major.
    w1m = jnp.transpose(w1, (0, 1, 3, 2)).reshape(k2, Cout, Cin).astype(dtype)
    w2m = jnp.transpose(w2, (0, 1, 3, 2)).reshape(k2, Cout, Cout).astype(dtype)
    b1m = b1.reshape(Cout, 1).astype(jnp.float32)
    b2m = b2.reshape(Cout, 1).astype(jnp.float32)

    # Static row/col decomposition of the conv1-output flat positions
    # (tile-independent; only the row offset t*th is dynamic in the kernel).
    q = np.arange(p1)
    idx = jnp.asarray(np.stack([q // wp, q % wp]).astype(np.int32))   # (2, P1)

    kernel = functools.partial(_fused_block_kernel, wp=wp, p1=p1, p2s=p2s,
                               ksize=ksize, W=W, H=H, th=th)

    out = pl.pallas_call(
        kernel,
        out_shape=jax.ShapeDtypeStruct((N, T, Cout, p2s), dtype),
        grid_spec=pltpu.PrefetchScalarGridSpec(
            num_scalar_prefetch=0,
            grid=(N, T),
            in_specs=[
                pl.BlockSpec((None, None, Cin, nr), lambda n, t: (n, t, 0, 0)),
                pl.BlockSpec((k2, Cout, Cin), lambda n, t: (0, 0, 0)),
                pl.BlockSpec((Cout, 1), lambda n, t: (0, 0)),
                pl.BlockSpec((k2, Cout, Cout), lambda n, t: (0, 0, 0)),
                pl.BlockSpec((Cout, 1), lambda n, t: (0, 0)),
                pl.BlockSpec((2, p1), lambda n, t: (0, 0)),
            ],
            out_specs=pl.BlockSpec((None, None, Cout, p2s),
                                   lambda n, t: (n, t, 0, 0)),
        ),
        compiler_params=pltpu.CompilerParams(
            dimension_semantics=("parallel", "parallel"),
            vmem_limit_bytes=int(vmem_limit),
        ),
    )(slabs, w1m, b1m, w2m, b2m, idx)

    # (N, T, Cout, P2S) is already channel-major: drop the alignment columns,
    # stitch row tiles, drop the width halo -> (N, Cout, H, W).
    out = out[..., :p2].reshape(N, T, Cout, th, wp)
    out = jnp.transpose(out, (0, 2, 1, 3, 4)).reshape(N, Cout, H, wp)
    return out[:, :, :, :W]


# ----------------------------------------------------------------------------
# Params / reference
# ----------------------------------------------------------------------------
def init_block_params(key, in_channels, out_channels, kernel_size=3):
    """Deterministic PyTorch-like uniform(-1/sqrt(fan_in), +) init, HWIO layout."""
    k1, k2, k3, k4 = jax.random.split(key, 4)
    fan1 = in_channels * kernel_size * kernel_size
    fan2 = out_channels * kernel_size * kernel_size
    lim1 = 1.0 / np.sqrt(fan1)
    lim2 = 1.0 / np.sqrt(fan2)
    w1 = jax.random.uniform(k1, (kernel_size, kernel_size, in_channels, out_channels),
                            jnp.float32, -lim1, lim1)
    b1 = jax.random.uniform(k2, (out_channels,), jnp.float32, -lim1, lim1)
    w2 = jax.random.uniform(k3, (kernel_size, kernel_size, out_channels, out_channels),
                            jnp.float32, -lim2, lim2)
    b2 = jax.random.uniform(k4, (out_channels,), jnp.float32, -lim2, lim2)
    return dict(w1=w1, b1=b1, w2=w2, b2=b2)


def _reference_forward(params, x_nchw):
    """Pure-JAX reference (lax.conv, full f32 precision) for correctness."""
    def conv_lrelu(x, w, b):
        y = lax.conv_general_dilated(
            x, w, window_strides=(1, 1), padding="SAME",
            dimension_numbers=("NHWC", "HWIO", "NHWC"),
            precision=lax.Precision.HIGHEST)
        y = y + b[None, None, None, :]
        return jnp.where(y > 0, y, 0.2 * y)
    x = jnp.transpose(x_nchw, (0, 2, 3, 1))
    x = conv_lrelu(x, params["w1"], params["b1"])
    x = conv_lrelu(x, params["w2"], params["b2"])
    return jnp.transpose(x, (0, 3, 1, 2))


if __name__ == "__main__":
    key = jax.random.PRNGKey(0)
    kx, kp = jax.random.split(key)

    batch, in_channels, out_channels, spatial = 2, 4, 8, 16
    x = jax.random.normal(kx, (batch, in_channels, spatial, spatial), jnp.float32)
    params = init_block_params(kp, in_channels, out_channels, kernel_size=3)

    fwd = jax.jit(block_forward, static_argnames=("tile_rows",))

    out = jax.block_until_ready(fwd(params, x))
    ref = jax.block_until_ready(_reference_forward(params, x))
    assert out.shape == (batch, out_channels, spatial, spatial)
    np.testing.assert_allclose(np.asarray(out), np.asarray(ref), rtol=2e-4, atol=2e-5)

    # Row-tiled path (T=4): exercises the conv1 halo masking across tile
    # boundaries and the tile-stitching epilogue.
    out_tiled = jax.block_until_ready(fwd(params, x, tile_rows=4))
    np.testing.assert_allclose(np.asarray(out_tiled), np.asarray(ref),
                               rtol=2e-4, atol=2e-5)

    print("KERNEL_OK")
</pallas_src>

<mosaic_0001>
module attributes {stable_mosaic.version = 11 : i64} {
  func.func @_fused_block_kernel(%arg0: i32, %arg1: i32, %arg2: memref<1x1x4x480xf32, #tpu.memory_space<vmem>>, %arg3: memref<9x8x4xf32, #tpu.memory_space<vmem>>, %arg4: memref<8x1xf32, #tpu.memory_space<vmem>>, %arg5: memref<9x8x8xf32, #tpu.memory_space<vmem>>, %arg6: memref<8x1xf32, #tpu.memory_space<vmem>>, %arg7: memref<2x426xi32, #tpu.memory_space<vmem>>, %arg8: memref<1x1x8x384xf32, #tpu.memory_space<vmem>>) attributes {dimension_semantics = [#tpu.dimension_semantics<parallel>, #tpu.dimension_semantics<parallel>], iteration_bounds = array<i64: 2, 1>, scalar_prefetch = 0 : i64, scratch_operands = 0 : i64, tpu.core_type = #tpu.core_type<tc>, window_params = [{transform_indices = @transform_0, window_bounds = array<i64: 1, 1, 4, 480>}, {pipeline_mode = #tpu.pipeline_mode<synchronous>, transform_indices = @transform_1, window_bounds = array<i64: 9, 8, 4>}, {pipeline_mode = #tpu.pipeline_mode<synchronous>, transform_indices = @transform_2, window_bounds = array<i64: 8, 1>}, {pipeline_mode = #tpu.pipeline_mode<synchronous>, transform_indices = @transform_3, window_bounds = array<i64: 9, 8, 8>}, {pipeline_mode = #tpu.pipeline_mode<synchronous>, transform_indices = @transform_4, window_bounds = array<i64: 8, 1>}, {pipeline_mode = #tpu.pipeline_mode<synchronous>, transform_indices = @transform_5, window_bounds = array<i64: 2, 426>}, {transform_indices = @transform_6, window_bounds = array<i64: 1, 1, 8, 384>}]} {
    %c0 = arith.constant 0 : index
    %c0_0 = arith.constant 0 : index
    %c0_1 = arith.constant 0 : index
    %0 = vector.load %arg3[%c0, %c0_0, %c0_1] : memref<9x8x4xf32, #tpu.memory_space<vmem>>, vector<1x8x4xf32>
    %1 = vector.shape_cast %0 : vector<1x8x4xf32> to vector<8x4xf32>
    %c0_2 = arith.constant 0 : index
    %c0_3 = arith.constant 0 : index
    %c0_4 = arith.constant 0 : index
    %c0_5 = arith.constant 0 : index
    %2 = vector.load %arg2[%c0_2, %c0_3, %c0_4, %c0_5] : memref<1x1x4x480xf32, #tpu.memory_space<vmem>>, vector<1x1x4x426xf32>
    %3 = vector.shape_cast %2 : vector<1x1x4x426xf32> to vector<4x426xf32>
    %cst = arith.constant dense<0.000000e+00> : vector<8x426xf32>
    %4 = tpu.matmul %1, %3, %cst {dimension_numbers = #tpu.dot_dimension_numbers<[1], [0], [0], [1], [0, 0, 1, 1], [], []>} : vector<8x4xf32>, vector<4x426xf32>, vector<8x426xf32> -> vector<8x426xf32>
    %c1 = arith.constant 1 : index
    %c0_6 = arith.constant 0 : index
    %c0_7 = arith.constant 0 : index
    %5 = vector.load %arg3[%c1, %c0_6, %c0_7] : memref<9x8x4xf32, #tpu.memory_space<vmem>>, vector<1x8x4xf32>
    %6 = vector.shape_cast %5 : vector<1x8x4xf32> to vector<8x4xf32>
    %c0_8 = arith.constant 0 : index
    %c0_9 = arith.constant 0 : index
    %c0_10 = arith.constant 0 : index
    %c1_11 = arith.constant 1 : index
    %7 = vector.load %arg2[%c0_8, %c0_9, %c0_10, %c1_11] : memref<1x1x4x480xf32, #tpu.memory_space<vmem>>, vector<1x1x4x426xf32>
    %8 = vector.shape_cast %7 : vector<1x1x4x426xf32> to vector<4x426xf32>
    %cst_12 = arith.constant dense<0.000000e+00> : vector<8x426xf32>
    %9 = tpu.matmul %6, %8, %cst_12 {dimension_numbers = #tpu.dot_dimension_numbers<[1], [0], [0], [1], [0, 0, 1, 1], [], []>} : vector<8x4xf32>, vector<4x426xf32>, vector<8x426xf32> -> vector<8x426xf32>
    %10 = arith.addf %4, %9 : vector<8x426xf32>
    %c2 = arith.constant 2 : index
    %c0_13 = arith.constant 0 : index
    %c0_14 = arith.constant 0 : index
    %11 = vector.load %arg3[%c2, %c0_13, %c0_14] : memref<9x8x4xf32, #tpu.memory_space<vmem>>, vector<1x8x4xf32>
    %12 = vector.shape_cast %11 : vector<1x8x4xf32> to vector<8x4xf32>
    %c0_15 = arith.constant 0 : index
    %c0_16 = arith.constant 0 : index
    %c0_17 = arith.constant 0 : index
    %c2_18 = arith.constant 2 : index
    %13 = vector.load %arg2[%c0_15, %c0_16, %c0_17, %c2_18] : memref<1x1x4x480xf32, #tpu.memory_space<vmem>>, vector<1x1x4x426xf32>
    %14 = vector.shape_cast %13 : vector<1x1x4x426xf32> to vector<4x426xf32>
    %cst_19 = arith.constant dense<0.000000e+00> : vector<8x426xf32>
    %15 = tpu.matmul %12, %14, %cst_19 {dimension_numbers = #tpu.dot_dimension_numbers<[1], [0], [0], [1], [0, 0, 1, 1], [], []>} : vector<8x4xf32>, vector<4x426xf32>, vector<8x426xf32> -> vector<8x426xf32>
    %16 = arith.addf %10, %15 : vector<8x426xf32>
    %c3 = arith.constant 3 : index
    %c0_20 = arith.constant 0 : index
    %c0_21 = arith.constant 0 : index
    %17 = vector.load %arg3[%c3, %c0_20, %c0_21] : memref<9x8x4xf32, #tpu.memory_space<vmem>>, vector<1x8x4xf32>
    %18 = vector.shape_cast %17 : vector<1x8x4xf32> to vector<8x4xf32>
    %c0_22 = arith.constant 0 : index
    %c0_23 = arith.constant 0 : index
    %c0_24 = arith.constant 0 : index
    %c20 = arith.constant 20 : index
    %19 = vector.load %arg2[%c0_22, %c0_23, %c0_24, %c20] : memref<1x1x4x480xf32, #tpu.memory_space<vmem>>, vector<1x1x4x426xf32>
    %20 = vector.shape_cast %19 : vector<1x1x4x426xf32> to vector<4x426xf32>
    %cst_25 = arith.constant dense<0.000000e+00> : vector<8x426xf32>
    %21 = tpu.matmul %18, %20, %cst_25 {dimension_numbers = #tpu.dot_dimension_numbers<[1], [0], [0], [1], [0, 0, 1, 1], [], []>} : vector<8x4xf32>, vector<4x426xf32>, vector<8x426xf32> -> vector<8x426xf32>
    %22 = arith.addf %16, %21 : vector<8x426xf32>
    %c4 = arith.constant 4 : index
    %c0_26 = arith.constant 0 : index
    %c0_27 = arith.constant 0 : index
    %23 = vector.load %arg3[%c4, %c0_26, %c0_27] : memref<9x8x4xf32, #tpu.memory_space<vmem>>, vector<1x8x4xf32>
    %24 = vector.shape_cast %23 : vector<1x8x4xf32> to vector<8x4xf32>
    %c0_28 = arith.constant 0 : index
    %c0_29 = arith.constant 0 : index
    %c0_30 = arith.constant 0 : index
    %c21 = arith.constant 21 : index
    %25 = vector.load %arg2[%c0_28, %c0_29, %c0_30, %c21] : memref<1x1x4x480xf32, #tpu.memory_space<vmem>>, vector<1x1x4x426xf32>
    %26 = vector.shape_cast %25 : vector<1x1x4x426xf32> to vector<4x426xf32>
    %cst_31 = arith.constant dense<0.000000e+00> : vector<8x426xf32>
    %27 = tpu.matmul %24, %26, %cst_31 {dimension_numbers = #tpu.dot_dimension_numbers<[1], [0], [0], [1], [0, 0, 1, 1], [], []>} : vector<8x4xf32>, vector<4x426xf32>, vector<8x426xf32> -> vector<8x426xf32>
    %28 = arith.addf %22, %27 : vector<8x426xf32>
    %c5 = arith.constant 5 : index
    %c0_32 = arith.constant 0 : index
    %c0_33 = arith.constant 0 : index
    %29 = vector.load %arg3[%c5, %c0_32, %c0_33] : memref<9x8x4xf32, #tpu.memory_space<vmem>>, vector<1x8x4xf32>
    %30 = vector.shape_cast %29 : vector<1x8x4xf32> to vector<8x4xf32>
    %c0_34 = arith.constant 0 : index
    %c0_35 = arith.constant 0 : index
    %c0_36 = arith.constant 0 : index
    %c22 = arith.constant 22 : index
    %31 = vector.load %arg2[%c0_34, %c0_35, %c0_36, %c22] : memref<1x1x4x480xf32, #tpu.memory_space<vmem>>, vector<1x1x4x426xf32>
    %32 = vector.shape_cast %31 : vector<1x1x4x426xf32> to vector<4x426xf32>
    %cst_37 = arith.constant dense<0.000000e+00> : vector<8x426xf32>
    %33 = tpu.matmul %30, %32, %cst_37 {dimension_numbers = #tpu.dot_dimension_numbers<[1], [0], [0], [1], [0, 0, 1, 1], [], []>} : vector<8x4xf32>, vector<4x426xf32>, vector<8x426xf32> -> vector<8x426xf32>
    %34 = arith.addf %28, %33 : vector<8x426xf32>
    %c6 = arith.constant 6 : index
    %c0_38 = arith.constant 0 : index
    %c0_39 = arith.constant 0 : index
    %35 = vector.load %arg3[%c6, %c0_38, %c0_39] : memref<9x8x4xf32, #tpu.memory_space<vmem>>, vector<1x8x4xf32>
    %36 = vector.shape_cast %35 : vector<1x8x4xf32> to vector<8x4xf32>
    %c0_40 = arith.constant 0 : index
    %c0_41 = arith.constant 0 : index
    %c0_42 = arith.constant 0 : index
    %c40 = arith.constant 40 : index
    %37 = vector.load %arg2[%c0_40, %c0_41, %c0_42, %c40] : memref<1x1x4x480xf32, #tpu.memory_space<vmem>>, vector<1x1x4x426xf32>
    %38 = vector.shape_cast %37 : vector<1x1x4x426xf32> to vector<4x426xf32>
    %cst_43 = arith.constant dense<0.000000e+00> : vector<8x426xf32>
    %39 = tpu.matmul %36, %38, %cst_43 {dimension_numbers = #tpu.dot_dimension_numbers<[1], [0], [0], [1], [0, 0, 1, 1], [], []>} : vector<8x4xf32>, vector<4x426xf32>, vector<8x426xf32> -> vector<8x426xf32>
    %40 = arith.addf %34, %39 : vector<8x426xf32>
    %c7 = arith.constant 7 : index
    %c0_44 = arith.constant 0 : index
    %c0_45 = arith.constant 0 : index
    %41 = vector.load %arg3[%c7, %c0_44, %c0_45] : memref<9x8x4xf32, #tpu.memory_space<vmem>>, vector<1x8x4xf32>
    %42 = vector.shape_cast %41 : vector<1x8x4xf32> to vector<8x4xf32>
    %c0_46 = arith.constant 0 : index
    %c0_47 = arith.constant 0 : index
    %c0_48 = arith.constant 0 : index
    %c41 = arith.constant 41 : index
    %43 = vector.load %arg2[%c0_46, %c0_47, %c0_48, %c41] : memref<1x1x4x480xf32, #tpu.memory_space<vmem>>, vector<1x1x4x426xf32>
    %44 = vector.shape_cast %43 : vector<1x1x4x426xf32> to vector<4x426xf32>
    %cst_49 = arith.constant dense<0.000000e+00> : vector<8x426xf32>
    %45 = tpu.matmul %42, %44, %cst_49 {dimension_numbers = #tpu.dot_dimension_numbers<[1], [0], [0], [1], [0, 0, 1, 1], [], []>} : vector<8x4xf32>, vector<4x426xf32>, vector<8x426xf32> -> vector<8x426xf32>
    %46 = arith.addf %40, %45 : vector<8x426xf32>
    %c8 = arith.constant 8 : index
    %c0_50 = arith.constant 0 : index
    %c0_51 = arith.constant 0 : index
    %47 = vector.load %arg3[%c8, %c0_50, %c0_51] : memref<9x8x4xf32, #tpu.memory_space<vmem>>, vector<1x8x4xf32>
    %48 = vector.shape_cast %47 : vector<1x8x4xf32> to vector<8x4xf32>
    %c0_52 = arith.constant 0 : index
    %c0_53 = arith.constant 0 : index
    %c0_54 = arith.constant 0 : index
    %c42 = arith.constant 42 : index
    %49 = vector.load %arg2[%c0_52, %c0_53, %c0_54, %c42] : memref<1x1x4x480xf32, #tpu.memory_space<vmem>>, vector<1x1x4x426xf32>
    %50 = vector.shape_cast %49 : vector<1x1x4x426xf32> to vector<4x426xf32>
    %cst_55 = arith.constant dense<0.000000e+00> : vector<8x426xf32>
    %51 = tpu.matmul %48, %50, %cst_55 {dimension_numbers = #tpu.dot_dimension_numbers<[1], [0], [0], [1], [0, 0, 1, 1], [], []>} : vector<8x4xf32>, vector<4x426xf32>, vector<8x426xf32> -> vector<8x426xf32>
    %52 = arith.addf %46, %51 : vector<8x426xf32>
    %c0_56 = arith.constant 0 : index
    %c0_57 = arith.constant 0 : index
    %53 = vector.load %arg4[%c0_56, %c0_57] : memref<8x1xf32, #tpu.memory_space<vmem>>, vector<8x1xf32>
    %54 = vector.broadcast %53 : vector<8x1xf32> to vector<8x426xf32>
    %55 = arith.addf %52, %54 : vector<8x426xf32>
    %cst_58 = arith.constant 2.000000e-01 : f32
    %56 = vector.broadcast %cst_58 : f32 to vector<8x426xf32>
    %57 = arith.mulf %56, %55 : vector<8x426xf32>
    %58 = arith.maximumf %55, %57 : vector<8x426xf32>
    %c16_i32 = arith.constant 16 : i32
    %59 = arith.muli %arg1, %c16_i32 : i32
    %c0_59 = arith.constant 0 : index
    %c0_60 = arith.constant 0 : index
    %60 = vector.load %arg7[%c0_59, %c0_60] : memref<2x426xi32, #tpu.memory_space<vmem>>, vector<1x426xi32>
    %c1_i32 = arith.constant 1 : i32
    %61 = arith.subi %59, %c1_i32 : i32
    %62 = vector.broadcast %61 : i32 to vector<1x426xi32>
    %63 = arith.addi %60, %62 : vector<1x426xi32>
    %c1_61 = arith.constant 1 : index
    %c0_62 = arith.constant 0 : index
    %64 = vector.load %arg7[%c1_61, %c0_62] : memref<2x426xi32, #tpu.memory_space<vmem>>, vector<1x426xi32>
    %c1_i32_63 = arith.constant 1 : i32
    %65 = vector.broadcast %c1_i32_63 : i32 to vector<1x426xi32>
    %66 = arith.cmpi sge, %64, %65 : vector<1x426xi32>
    %c17_i32 = arith.constant 17 : i32
    %67 = vector.broadcast %c17_i32 : i32 to vector<1x426xi32>
    %68 = arith.cmpi slt, %64, %67 : vector<1x426xi32>
    %69 = arith.andi %66, %68 : vector<1x426xi1>
    %c0_i32 = arith.constant 0 : i32
    %70 = vector.broadcast %c0_i32 : i32 to vector<1x426xi32>
    %71 = arith.cmpi sge, %63, %70 : vector<1x426xi32>
    %72 = arith.andi %69, %71 : vector<1x426xi1>
    %c16_i32_64 = arith.constant 16 : i32
    %73 = vector.broadcast %c16_i32_64 : i32 to vector<1x426xi32>
    %74 = arith.cmpi slt, %63, %73 : vector<1x426xi32>
    %75 = arith.andi %72, %74 : vector<1x426xi1>
    %cst_65 = arith.constant 0.000000e+00 : f32
    %76 = vector.shape_cast %75 : vector<1x426xi1> to vector<1x426xi1>
    %77 = vector.broadcast %76 : vector<1x426xi1> to vector<8x426xi1>
    %78 = vector.broadcast %cst_65 : f32 to vector<8x426xf32>
    %79 = arith.select %77, %58, %78 : vector<8x426xi1>, vector<8x426xf32>
    %c0_66 = arith.constant 0 : index
    %c0_67 = arith.constant 0 : index
    %c0_68 = arith.constant 0 : index
    %80 = vector.load %arg5[%c0_66, %c0_67, %c0_68] : memref<9x8x8xf32, #tpu.memory_space<vmem>>, vector<1x8x8xf32>
    %81 = vector.shape_cast %80 : vector<1x8x8xf32> to vector<8x8xf32>
    %82 = vector.extract_strided_slice %79 {offsets = [0, 0], sizes = [8, 384], strides = [1, 1]} : vector<8x426xf32> to vector<8x384xf32>
    %cst_69 = arith.constant dense<0.000000e+00> : vector<8x384xf32>
    %83 = tpu.matmul %81, %82, %cst_69 {dimension_numbers = #tpu.dot_dimension_numbers<[1], [0], [0], [1], [0, 0, 1, 1], [], []>} : vector<8x8xf32>, vector<8x384xf32>, vector<8x384xf32> -> vector<8x384xf32>
    %c1_70 = arith.constant 1 : index
    %c0_71 = arith.constant 0 : index
    %c0_72 = arith.constant 0 : index
    %84 = vector.load %arg5[%c1_70, %c0_71, %c0_72] : memref<9x8x8xf32, #tpu.memory_space<vmem>>, vector<1x8x8xf32>
    %85 = vector.shape_cast %84 : vector<1x8x8xf32> to vector<8x8xf32>
    %86 = vector.extract_strided_slice %79 {offsets = [0, 1], sizes = [8, 384], strides = [1, 1]} : vector<8x426xf32> to vector<8x384xf32>
    %cst_73 = arith.constant dense<0.000000e+00> : vector<8x384xf32>
    %87 = tpu.matmul %85, %86, %cst_73 {dimension_numbers = #tpu.dot_dimension_numbers<[1], [0], [0], [1], [0, 0, 1, 1], [], []>} : vector<8x8xf32>, vector<8x384xf32>, vector<8x384xf32> -> vector<8x384xf32>
    %88 = arith.addf %83, %87 : vector<8x384xf32>
    %c2_74 = arith.constant 2 : index
    %c0_75 = arith.constant 0 : index
    %c0_76 = arith.constant 0 : index
    %89 = vector.load %arg5[%c2_74, %c0_75, %c0_76] : memref<9x8x8xf32, #tpu.memory_space<vmem>>, vector<1x8x8xf32>
    %90 = vector.shape_cast %89 : vector<1x8x8xf32> to vector<8x8xf32>
    %91 = vector.extract_strided_slice %79 {offsets = [0, 2], sizes = [8, 384], strides = [1, 1]} : vector<8x426xf32> to vector<8x384xf32>
    %cst_77 = arith.constant dense<0.000000e+00> : vector<8x384xf32>
    %92 = tpu.matmul %90, %91, %cst_77 {dimension_numbers = #tpu.dot_dimension_numbers<[1], [0], [0], [1], [0, 0, 1, 1], [], []>} : vector<8x8xf32>, vector<8x384xf32>, vector<8x384xf32> -> vector<8x384xf32>
    %93 = arith.addf %88, %92 : vector<8x384xf32>
    %c3_78 = arith.constant 3 : index
    %c0_79 = arith.constant 0 : index
    %c0_80 = arith.constant 0 : index
    %94 = vector.load %arg5[%c3_78, %c0_79, %c0_80] : memref<9x8x8xf32, #tpu.memory_space<vmem>>, vector<1x8x8xf32>
    %95 = vector.shape_cast %94 : vector<1x8x8xf32> to vector<8x8xf32>
    %96 = vector.extract_strided_slice %79 {offsets = [0, 20], sizes = [8, 384], strides = [1, 1]} : vector<8x426xf32> to vector<8x384xf32>
    %cst_81 = arith.constant dense<0.000000e+00> : vector<8x384xf32>
    %97 = tpu.matmul %95, %96, %cst_81 {dimension_numbers = #tpu.dot_dimension_numbers<[1], [0], [0], [1], [0, 0, 1, 1], [], []>} : vector<8x8xf32>, vector<8x384xf32>, vector<8x384xf32> -> vector<8x384xf32>
    %98 = arith.addf %93, %97 : vector<8x384xf32>
    %c4_82 = arith.constant 4 : index
    %c0_83 = arith.constant 0 : index
    %c0_84 = arith.constant 0 : index
    %99 = vector.load %arg5[%c4_82, %c0_83, %c0_84] : memref<9x8x8xf32, #tpu.memory_space<vmem>>, vector<1x8x8xf32>
    %100 = vector.shape_cast %99 : vector<1x8x8xf32> to vector<8x8xf32>
    %101 = vector.extract_strided_slice %79 {offsets = [0, 21], sizes = [8, 384], strides = [1, 1]} : vector<8x426xf32> to vector<8x384xf32>
    %cst_85 = arith.constant dense<0.000000e+00> : vector<8x384xf32>
    %102 = tpu.matmul %100, %101, %cst_85 {dimension_numbers = #tpu.dot_dimension_numbers<[1], [0], [0], [1], [0, 0, 1, 1], [], []>} : vector<8x8xf32>, vector<8x384xf32>, vector<8x384xf32> -> vector<8x384xf32>
    %103 = arith.addf %98, %102 : vector<8x384xf32>
    %c5_86 = arith.constant 5 : index
    %c0_87 = arith.constant 0 : index
    %c0_88 = arith.constant 0 : index
    %104 = vector.load %arg5[%c5_86, %c0_87, %c0_88] : memref<9x8x8xf32, #tpu.memory_space<vmem>>, vector<1x8x8xf32>
    %105 = vector.shape_cast %104 : vector<1x8x8xf32> to vector<8x8xf32>
    %106 = vector.extract_strided_slice %79 {offsets = [0, 22], sizes = [8, 384], strides = [1, 1]} : vector<8x426xf32> to vector<8x384xf32>
    %cst_89 = arith.constant dense<0.000000e+00> : vector<8x384xf32>
    %107 = tpu.matmul %105, %106, %cst_89 {dimension_numbers = #tpu.dot_dimension_numbers<[1], [0], [0], [1], [0, 0, 1, 1], [], []>} : vector<8x8xf32>, vector<8x384xf32>, vector<8x384xf32> -> vector<8x384xf32>
    %108 = arith.addf %103, %107 : vector<8x384xf32>
    %c6_90 = arith.constant 6 : index
    %c0_91 = arith.constant 0 : index
    %c0_92 = arith.constant 0 : index
    %109 = vector.load %arg5[%c6_90, %c0_91, %c0_92] : memref<9x8x8xf32, #tpu.memory_space<vmem>>, vector<1x8x8xf32>
    %110 = vector.shape_cast %109 : vector<1x8x8xf32> to vector<8x8xf32>
    %111 = vector.extract_strided_slice %79 {offsets = [0, 40], sizes = [8, 384], strides = [1, 1]} : vector<8x426xf32> to vector<8x384xf32>
    %cst_93 = arith.constant dense<0.000000e+00> : vector<8x384xf32>
    %112 = tpu.matmul %110, %111, %cst_93 {dimension_numbers = #tpu.dot_dimension_numbers<[1], [0], [0], [1], [0, 0, 1, 1], [], []>} : vector<8x8xf32>, vector<8x384xf32>, vector<8x384xf32> -> vector<8x384xf32>
    %113 = arith.addf %108, %112 : vector<8x384xf32>
    %c7_94 = arith.constant 7 : index
    %c0_95 = arith.constant 0 : index
    %c0_96 = arith.constant 0 : index
    %114 = vector.load %arg5[%c7_94, %c0_95, %c0_96] : memref<9x8x8xf32, #tpu.memory_space<vmem>>, vector<1x8x8xf32>
    %115 = vector.shape_cast %114 : vector<1x8x8xf32> to vector<8x8xf32>
    %116 = vector.extract_strided_slice %79 {offsets = [0, 41], sizes = [8, 384], strides = [1, 1]} : vector<8x426xf32> to vector<8x384xf32>
    %cst_97 = arith.constant dense<0.000000e+00> : vector<8x384xf32>
    %117 = tpu.matmul %115, %116, %cst_97 {dimension_numbers = #tpu.dot_dimension_numbers<[1], [0], [0], [1], [0, 0, 1, 1], [], []>} : vector<8x8xf32>, vector<8x384xf32>, vector<8x384xf32> -> vector<8x384xf32>
    %118 = arith.addf %113, %117 : vector<8x384xf32>
    %c8_98 = arith.constant 8 : index
    %c0_99 = arith.constant 0 : index
    %c0_100 = arith.constant 0 : index
    %119 = vector.load %arg5[%c8_98, %c0_99, %c0_100] : memref<9x8x8xf32, #tpu.memory_space<vmem>>, vector<1x8x8xf32>
    %120 = vector.shape_cast %119 : vector<1x8x8xf32> to vector<8x8xf32>
    %121 = vector.extract_strided_slice %79 {offsets = [0, 42], sizes = [8, 384], strides = [1, 1]} : vector<8x426xf32> to vector<8x384xf32>
    %cst_101 = arith.constant dense<0.000000e+00> : vector<8x384xf32>
    %122 = tpu.matmul %120, %121, %cst_101 {dimension_numbers = #tpu.dot_dimension_numbers<[1], [0], [0], [1], [0, 0, 1, 1], [], []>} : vector<8x8xf32>, vector<8x384xf32>, vector<8x384xf32> -> vector<8x384xf32>
    %123 = arith.addf %118, %122 : vector<8x384xf32>
    %c0_102 = arith.constant 0 : index
    %c0_103 = arith.constant 0 : index
    %124 = vector.load %arg6[%c0_102, %c0_103] : memref<8x1xf32, #tpu.memory_space<vmem>>, vector<8x1xf32>
    %125 = vector.broadcast %124 : vector<8x1xf32> to vector<8x384xf32>
    %126 = arith.addf %123, %125 : vector<8x384xf32>
    %cst_104 = arith.constant 2.000000e-01 : f32
    %127 = vector.broadcast %cst_104 : f32 to vector<8x384xf32>
    %128 = arith.mulf %127, %126 : vector<8x384xf32>
    %129 = arith.maximumf %126, %128 : vector<8x384xf32>
    %c0_105 = arith.constant 0 : index
    %c0_106 = arith.constant 0 : index
    %c0_107 = arith.constant 0 : index
    %c0_108 = arith.constant 0 : index
    %130 = vector.load %arg8[%c0_105, %c0_106, %c0_107, %c0_108] : memref<1x1x8x384xf32, #tpu.memory_space<vmem>>, vector<1x1x8x384xf32>
    %131 = vector.shape_cast %130 : vector<1x1x8x384xf32> to vector<8x384xf32>
    %132 = vector.shape_cast %129 : vector<8x384xf32> to vector<1x1x8x384xf32>
    tpu.vector_store %arg8[%c0_105, %c0_106, %c0_107, %c0_108], %132 {strides = array<i32>} : memref<1x1x8x384xf32, #tpu.memory_space<vmem>>, vector<1x1x8x384xf32>,
    return
  }
  func.func @transform_0(%arg0: i32, %arg1: i32) -> (i32, i32, i32, i32) {
    %c0_i32 = arith.constant 0 : i32
    %c0_i32_0 = arith.constant 0 : i32
    %c0_i32_1 = arith.constant 0 : i32
    return %arg0, %arg1, %c0_i32, %c0_i32_0 : i32, i32, i32, i32
  }
  func.func @transform_1(%arg0: i32, %arg1: i32) -> (i32, i32, i32) {
    %c0_i32 = arith.constant 0 : i32
    %c0_i32_0 = arith.constant 0 : i32
    %c0_i32_1 = arith.constant 0 : i32
    %c0_i32_2 = arith.constant 0 : i32
    return %c0_i32, %c0_i32_0, %c0_i32_1 : i32, i32, i32
  }
  func.func @transform_2(%arg0: i32, %arg1: i32) -> (i32, i32) {
    %c0_i32 = arith.constant 0 : i32
    %c0_i32_0 = arith.constant 0 : i32
    %c0_i32_1 = arith.constant 0 : i32
    return %c0_i32, %c0_i32_0 : i32, i32
  }
  func.func @transform_3(%arg0: i32, %arg1: i32) -> (i32, i32, i32) {
    %c0_i32 = arith.constant 0 : i32
    %c0_i32_0 = arith.constant 0 : i32
    %c0_i32_1 = arith.constant 0 : i32
    %c0_i32_2 = arith.constant 0 : i32
    return %c0_i32, %c0_i32_0, %c0_i32_1 : i32, i32, i32
  }
  func.func @transform_4(%arg0: i32, %arg1: i32) -> (i32, i32) {
    %c0_i32 = arith.constant 0 : i32
    %c0_i32_0 = arith.constant 0 : i32
    %c0_i32_1 = arith.constant 0 : i32
    return %c0_i32, %c0_i32_0 : i32, i32
  }
  func.func @transform_5(%arg0: i32, %arg1: i32) -> (i32, i32) {
    %c0_i32 = arith.constant 0 : i32
    %c0_i32_0 = arith.constant 0 : i32
    %c0_i32_1 = arith.constant 0 : i32
    return %c0_i32, %c0_i32_0 : i32, i32
  }
  func.func @transform_6(%arg0: i32, %arg1: i32) -> (i32, i32, i32, i32) {
    %c0_i32 = arith.constant 0 : i32
    %c0_i32_0 = arith.constant 0 : i32
    %c0_i32_1 = arith.constant 0 : i32
    return %arg0, %arg1, %c0_i32, %c0_i32_0 : i32, i32, i32, i32
  }
}

</mosaic_0001>

<llo_original>
// kernel: block_forward.1
$region0: #{block_forward.1}
  #allocation0 [shape = 'u32[]', space=smem, size = 0x4, offset = 0x4, fixed_abs, tag = 'smem constant byte address 0x4 - core index']
  #allocation1 [shape = 'u32[72,128]{1,0:T(1,128)}', space=vmem, size = 0x9000, scoped, tag = 'internal scratch']
  %s0 = inlined_call_operand.vmem [shape: f32[2,1,4,480], index: 0, kind: input, shape index: {}]
  %s1 = inlined_call_operand.vmem [shape: f32[9,8,4], index: 1, kind: input, shape index: {}]
  %s2 = inlined_call_operand.vmem [shape: f32[8,1], index: 2, kind: input, shape index: {}]
  %s3 = inlined_call_operand.vmem [shape: f32[9,8,8], index: 3, kind: input, shape index: {}]
  %s4 = inlined_call_operand.vmem [shape: f32[8,1], index: 4, kind: input, shape index: {}]
  %s5 = inlined_call_operand.vmem [shape: s32[2,426], index: 5, kind: input, shape index: {}]
  %s6 = inlined_call_operand.vmem [shape: f32[2,1,8,384], index: 6, kind: output, shape index: {}]
  %s7 = sld [smem:[#allocation0]]
  $region57: #{block_forward.1} parent=0
    _
  %s9 = ssub.s32 1, %s7
  %s10 = scalar_select 0, %s9, %s7
  loop: start=0, step=1, limit=4
  $region2: #{block_forward.1} parent=0 // loop_pre_header
    _
  $region3: #{block_forward.1} parent=0 // loop_header
    %s12 = sphi 0, %s16
    %p13 = scmp.ge.s32.totalorder %s12, 4
    %s19 = sphi 0, %s31
    %s20 = sphi 0, %s27
    %s21 = sphi 0, %s19
    %s22 = sphi 0, %s20
    %s23 = sphi 0, %s21
    %s24 = sphi 0, %s22
    %s36 = sphi 0, %s38
    %s39 = sphi 0, %s36
    %s40 = sphi 0, %s39
    %s56 = sphi 0, %s40
    %s60 = sphi 0, %s60
    %s62 = sphi 0, %s60
    %s63 = sphi 0, %s62
    %s77 = sphi 0, %s63
    %s81 = sphi 0, %s81
    %s83 = sphi 0, %s81
    %s84 = sphi 0, %s83
    %s98 = sphi 0, %s84
    %s102 = sphi 0, %s102
    %s104 = sphi 0, %s102
    %s105 = sphi 0, %s104
    %s119 = sphi 0, %s105
    %s123 = sphi 0, %s123
    %s125 = sphi 0, %s123
    %s126 = sphi 0, %s125
    %s140 = sphi 0, %s126
    %s144 = sphi 0, %s144
    %s146 = sphi 0, %s144
    %s147 = sphi 0, %s146
    %s161 = sphi 0, %s147
    %s169 = sphi 0, %s171
    %s172 = sphi 0, %s169
    %s173 = sphi 0, %s172
    %s189 = sphi 0, %s173
  $region4: #{block_forward.1} parent=0 // loop_header_branch
    %15 = sbr.rel (%p13) target = $region8
  $region5: #{block_forward.1} parent=0 // loop_body
    %s17 = ssub.s32 %s12, 1
    %s18 = ssub.s32 %s12, 2
    %s25 = sadd.s32 1, %s20
    %p26 = scmp.ge.s32.totalorder %s25, 1
    %s27 = scalar_select %p26, 0, %s25
    %s28 = sadd.s32 1, %s19
    %s29 = scalar_select %p26, %s28, %s19
    %p30 = scmp.ge.s32.totalorder %s29, 2
    %s31 = scalar_select %p30, 0, %s29
    %s32 = ssub.s32 %s19, %s31
    %s33 = ssub.s32 %s20, %s27
    %s34 = sor.u32 %s32, %s33
    %p35 = scmp.eq.s32.totalorder %s34, 0
    %s37 = sadd.s32 %s36, 1
    %s38 = scalar_select %p35, %s36, %s37
    %p41 = pneg %p35
    %p42 = scmp.eq.s32.totalorder %s12, 1
    %p43 = por %p41, %p42
    %p44 = scmp.ne.s32.totalorder %s36, %s39
    %p45 = scmp.eq.s32.totalorder %s12, 0
    %p46 = por %p44, %p45
    %p47 = scmp.ne.s32.totalorder %s36, %s39
    %p48 = scmp.eq.s32.totalorder %s17, 1
    %p49 = por %p47, %p48
    %p50 = scmp.ne.s32.totalorder %s39, %s40
    %p51 = scmp.eq.s32.totalorder %s17, 0
    %p52 = por %p50, %p51
    %p53 = scmp.ne.s32.totalorder %s39, %s40
    %p54 = scmp.eq.s32.totalorder %s18, 1
    %p55 = por %p53, %p54
    %p57 = scmp.ne.s32.totalorder %s40, %s56
    %p58 = scmp.eq.s32.totalorder %s18, 0
    %p59 = por %p57, %p58
    %s61 = sadd.s32 %s60, 1
    %p64 = scmp.eq.s32.totalorder %s12, 1
    %p65 = scmp.ne.s32.totalorder %s60, %s62
    %p66 = scmp.eq.s32.totalorder %s12, 0
    %p67 = por %p65, %p66
    %p68 = scmp.ne.s32.totalorder %s60, %s62
    %p69 = scmp.eq.s32.totalorder %s17, 1
    %p70 = por %p68, %p69
    %p71 = scmp.ne.s32.totalorder %s62, %s63
    %p72 = scmp.eq.s32.totalorder %s17, 0
    %p73 = por %p71, %p72
    %p74 = scmp.ne.s32.totalorder %s62, %s63
    %p75 = scmp.eq.s32.totalorder %s18, 1
    %p76 = por %p74, %p75
    %p78 = scmp.ne.s32.totalorder %s63, %s77
    %p79 = scmp.eq.s32.totalorder %s18, 0
    %p80 = por %p78, %p79
    %s82 = sadd.s32 %s81, 1
    %p85 = scmp.eq.s32.totalorder %s12, 1
    %p86 = scmp.ne.s32.totalorder %s81, %s83
    %p87 = scmp.eq.s32.totalorder %s12, 0
    %p88 = por %p86, %p87
    %p89 = scmp.ne.s32.totalorder %s81, %s83
    %p90 = scmp.eq.s32.totalorder %s17, 1
    %p91 = por %p89, %p90
    %p92 = scmp.ne.s32.totalorder %s83, %s84
    %p93 = scmp.eq.s32.totalorder %s17, 0
    %p94 = por %p92, %p93
    %p95 = scmp.ne.s32.totalorder %s83, %s84
    %p96 = scmp.eq.s32.totalorder %s18, 1
    %p97 = por %p95, %p96
    %p99 = scmp.ne.s32.totalorder %s84, %s98
    %p100 = scmp.eq.s32.totalorder %s18, 0
    %p101 = por %p99, %p100
    %s103 = sadd.s32 %s102, 1
    %p106 = scmp.eq.s32.totalorder %s12, 1
    %p107 = scmp.ne.s32.totalorder %s102, %s104
    %p108 = scmp.eq.s32.totalorder %s12, 0
    %p109 = por %p107, %p108
    %p110 = scmp.ne.s32.totalorder %s102, %s104
    %p111 = scmp.eq.s32.totalorder %s17, 1
    %p112 = por %p110, %p111
    %p113 = scmp.ne.s32.totalorder %s104, %s105
    %p114 = scmp.eq.s32.totalorder %s17, 0
    %p115 = por %p113, %p114
    %p116 = scmp.ne.s32.totalorder %s104, %s105
    %p117 = scmp.eq.s32.totalorder %s18, 1
    %p118 = por %p116, %p117
    %p120 = scmp.ne.s32.totalorder %s105, %s119
    %p121 = scmp.eq.s32.totalorder %s18, 0
    %p122 = por %p120, %p121
    %s124 = sadd.s32 %s123, 1
    %p127 = scmp.eq.s32.totalorder %s12, 1
    %p128 = scmp.ne.s32.totalorder %s123, %s125
    %p129 = scmp.eq.s32.totalorder %s12, 0
    %p130 = por %p128, %p129
    %p131 = scmp.ne.s32.totalorder %s123, %s125
    %p132 = scmp.eq.s32.totalorder %s17, 1
    %p133 = por %p131, %p132
    %p134 = scmp.ne.s32.totalorder %s125, %s126
    %p135 = scmp.eq.s32.totalorder %s17, 0
    %p136 = por %p134, %p135
    %p137 = scmp.ne.s32.totalorder %s125, %s126
    %p138 = scmp.eq.s32.totalorder %s18, 1
    %p139 = por %p137, %p138
    %p141 = scmp.ne.s32.totalorder %s126, %s140
    %p142 = scmp.eq.s32.totalorder %s18, 0
    %p143 = por %p141, %p142
    %s145 = sadd.s32 %s144, 1
    %p148 = scmp.eq.s32.totalorder %s12, 1
    %p149 = scmp.ne.s32.totalorder %s144, %s146
    %p150 = scmp.eq.s32.totalorder %s12, 0
    %p151 = por %p149, %p150
    %p152 = scmp.ne.s32.totalorder %s144, %s146
    %p153 = scmp.eq.s32.totalorder %s17, 1
    %p154 = por %p152, %p153
    %p155 = scmp.ne.s32.totalorder %s146, %s147
    %p156 = scmp.eq.s32.totalorder %s17, 0
    %p157 = por %p155, %p156
    %p158 = scmp.ne.s32.totalorder %s146, %s147
    %p159 = scmp.eq.s32.totalorder %s18, 1
    %p160 = por %p158, %p159
    %p162 = scmp.ne.s32.totalorder %s147, %s161
    %p163 = scmp.eq.s32.totalorder %s18, 0
    %p164 = por %p162, %p163
    %s165 = ssub.s32 %s19, %s31
    %s166 = ssub.s32 %s20, %s27
    %s167 = sor.u32 %s165, %s166
    %p168 = scmp.eq.s32.totalorder %s167, 0
    %s170 = sadd.s32 %s169, 1
    %s171 = scalar_select %p168, %s169, %s170
    %p174 = pneg %p168
    %p175 = scmp.eq.s32.totalorder %s12, 1
    %p176 = por %p174, %p175
    %p177 = scmp.ne.s32.totalorder %s169, %s172
    %p178 = scmp.eq.s32.totalorder %s12, 0
    %p179 = por %p177, %p178
    %p180 = scmp.ne.s32.totalorder %s169, %s172
    %p181 = scmp.eq.s32.totalorder %s17, 1
    %p182 = por %p180, %p181
    %p183 = scmp.ne.s32.totalorder %s172, %s173
    %p184 = scmp.eq.s32.totalorder %s17, 0
    %p185 = por %p183, %p184
    %p186 = scmp.ne.s32.totalorder %s172, %s173
    %p187 = scmp.eq.s32.totalorder %s18, 1
    %p188 = por %p186, %p187
    %p190 = scmp.ne.s32.totalorder %s173, %s189
    %p191 = scmp.eq.s32.totalorder %s18, 0
    %p192 = por %p190, %p191
    %p193 = scmp.le.s32.totalorder 1, %s12
    %p194 = scmp.lt.s32.totalorder %s12, 3
    %p195 = pnand %p193, %p194
    %p196 = pneg %p195
    // Predicated region
    $region9: #{block_forward.1} parent=5 // pred_check
      _
    $region10: #{block_forward.1} parent=5 // pred_check_branch
      %198 = sbr.rel (%p195) target = $region12
    $region11: #{block_forward.1} parent=5 // pred_region
      %s199 = ssub.s32 %s12, 1
      // Predicated region
      $region13: #{block_forward.1} parent=11 // pred_check
        %p200 = pneg %p73
      $region14: #{block_forward.1} parent=11 // pred_check_branch
        %202 = sbr.rel (%p200) target = $region16
      $region15: #{block_forward.1} parent=11 // pred_region
        _
      $region16: #{block_forward.1} parent=11 // pred_fallthru
        _
      // Predicated region
      $region17: #{block_forward.1} parent=11 // pred_check
        %p203 = pneg %p94
      $region18: #{block_forward.1} parent=11 // pred_check_branch
        %205 = sbr.rel (%p203) target = $region20
      $region19: #{block_forward.1} parent=11 // pred_region
        _
      $region20: #{block_forward.1} parent=11 // pred_fallthru
        _
      // Predicated region
      $region21: #{block_forward.1} parent=11 // pred_check
        %p206 = pneg %p115
      $region22: #{block_forward.1} parent=11 // pred_check_branch
        %208 = sbr.rel (%p206) target = $region24
      $region23: #{block_forward.1} parent=11 // pred_region
        _
      $region24: #{block_forward.1} parent=11 // pred_fallthru
        _
      // Predicated region
      $region25: #{block_forward.1} parent=11 // pred_check
        %p209 = pneg %p136
      $region26: #{block_forward.1} parent=11 // pred_check_branch
        %211 = sbr.rel (%p209) target = $region28
      $region27: #{block_forward.1} parent=11 // pred_region
        _
      $region28: #{block_forward.1} parent=11 // pred_fallthru
        _
      // Predicated region
      $region29: #{block_forward.1} parent=11 // pred_check
        %p212 = pneg %p157
      $region30: #{block_forward.1} parent=11 // pred_check_branch
        %214 = sbr.rel (%p212) target = $region32
      $region31: #{block_forward.1} parent=11 // pred_region
        _
      $region32: #{block_forward.1} parent=11 // pred_fallthru
        _
    $region12: #{block_forward.1} parent=5 // pred_fallthru
      _
    %p215 = scmp.lt.s32.totalorder %s12, 2
    // Predicated region
    $region33: #{block_forward.1} parent=5 // pred_check
      %p216 = pneg %p215
    $region34: #{block_forward.1} parent=5 // pred_check_branch
      %218 = sbr.rel (%p216) target = $region36
    $region35: #{block_forward.1} parent=5 // pred_region
      // Predicated region
      $region37: #{block_forward.1} parent=35 // pred_check
        %p219 = pneg %p46
      $region38: #{block_forward.1} parent=35 // pred_check_branch
        %221 = sbr.rel (%p219) target = $region40
      $region39: #{block_forward.1} parent=35 // pred_region
        %p222 = scmp.lt.s32.totalorder %s19, 1
        %s223 = scalar_select %p222, %s19, 1
        %p224 = scmp.lt.s32.totalorder %s20, 0
        %s225 = scalar_select %p224, %s20, 0
        %s226 = smul.addr %s225, 4
        %s227 = smul.addr %s223, 4
        %s228 = sadd.s32 %s226, %s227
        %s229 = smul.addr %s228, 4
        %s230 = scalar_lea.vmem %s0, %s229
      $region40: #{block_forward.1} parent=35 // pred_fallthru
        _
    $region36: #{block_forward.1} parent=5 // pred_fallthru
      _
    %p231 = scmp.le.s32.totalorder 1, %s12
    %p232 = scmp.lt.s32.totalorder %s12, 3
    %p233 = pnand %p231, %p232
    %p234 = pneg %p233
    // Predicated region
    $region41: #{block_forward.1} parent=5 // pred_check
      _
    $region42: #{block_forward.1} parent=5 // pred_check_branch
      %236 = sbr.rel (%p233) target = $region44
    $region43: #{block_forward.1} parent=5 // pred_region
      %s237 = ssub.s32 %s12, 1
      %p238 = scmp.lt.s32.totalorder %s21, 1
      %s239 = scalar_select %p238, %s21, 1
      %p240 = scmp.lt.s32.totalorder %s22, 0
      %s241 = scalar_select %p240, %s22, 0
      %s242 = smul.addr %s241, 4
      %s243 = smul.addr %s239, 4
      %s244 = sadd.s32 %s242, %s243
      %s245 = smul.addr %s244, 4
      %s246 = scalar_lea.vmem %s0, %s245
      %p247 = pneg %p52
      %p248 = pneg %p49
      %p249 = pneg %p73
      %p250 = pneg %p70
      %p251 = pneg %p94
      %p252 = pneg %p91
      %p253 = pneg %p115
      %p254 = pneg %p112
      %p255 = pneg %p136
      %p256 = pneg %p133
      %p257 = pneg %p157
      %p258 = pneg %p154
      %p259 = pneg %p185
      %p260 = pneg %p182
      %p261 = scmp.lt.s32.totalorder %s21, 1
      %s262 = scalar_select %p261, %s21, 1
      %p263 = scmp.lt.s32.totalorder %s22, 0
      %s264 = scalar_select %p263, %s22, 0
      %s265 = smul.addr %s264, 3
      %s266 = smul.addr %s262, 3
      %s267 = sadd.s32 %s265, %s266
      %s268 = smul.addr %s267, 8
      %s269 = scalar_lea.vmem %s6, %s268
      %p270 = scmp.lt.s32.totalorder %s21, 1
      %s271 = scalar_select %p270, %s21, 1
      %p272 = scmp.lt.s32.totalorder %s22, 0
      %s273 = scalar_select %p272, %s22, 0
      %s274 = smul.addr %s273, 4
      %s275 = smul.addr %s271, 4
      %s276 = sadd.s32 %s274, %s275
      %s277 = smul.addr %s276, 4
      %s278 = scalar_lea.vmem %s0, %s277
      %p279 = scmp.lt.s32.totalorder %s21, 1
      %s280 = scalar_select %p279, %s21, 1
      %p281 = scmp.lt.s32.totalorder %s22, 0
      %s282 = scalar_select %p281, %s22, 0
      %s283 = smul.addr %s282, 3
      %s284 = smul.addr %s280, 3
      %s285 = sadd.s32 %s283, %s284
      %s286 = smul.addr %s285, 8
      %s287 = scalar_lea.vmem %s6, %s286
      %v288 = vld [vmem:[%s1] sm:$0xff]
      %v289 = vld [vmem:[%s278] sm:$0xff]
      %v290 = vld [vmem:[%s278 + $0x8] sm:$0xff]
      %s291 = scalar_lea.vmem %s1, 8
      %v292 = vld [vmem:[%s291] sm:$0xff]
      %295 = vst [vmem:[#allocation1] ss:$2 sm:$0xff] %v289
      %s296 = scalar_lea.vmem [#allocation1], 16
      %297 = vst [vmem:[%s296] ss:$2 sm:$0xff] %v290
      %v298 = vld.sshfl [vmem:[#allocation1] sm:$0xff pattern:$0x75316420]
      %v299 = vld.sshfl [vmem:[#allocation1 + $0x8] sm:$0xff pattern:$0x75316420]
      %v300 = vld.sshfl [vmem:[#allocation1 + $0x10] sm:$0xff pattern:$0x75316420]
      %v301 = vld.sshfl [vmem:[#allocation1 + $0x18] sm:$0xff pattern:$0x75316420]
      %302 = vrot.lane.b32.xlu0 %v298, 127
      %v303 = vpop.permute.xlu0 %302
      %304 = vrot.lane.b32.xlu0 %v299, 127
      %v305 = vpop.permute.xlu0 %304
      %306 = vrot.lane.b32.xlu0 %v300, 127
      %v307 = vpop.permute.xlu0 %306
      %308 = vrot.lane.b32.xlu0 %v301, 127
      %v309 = vpop.permute.xlu0 %308
      %vm310 = vcmask 1039360
      %v311 = vsel %vm310, %v303, %v305
      %v312 = vsel %vm310, %v305, %v307
      %v313 = vsel %vm310, %v307, %v309
      %vm314 = vcmask 31744
      %v316 = vsel %vm314, %v292, 0
      %vm318 = vcmask 1043456
      %v319 = vsel %vm318, %v311, 0
      %v321 = vsel %vm318, %v312, 0
      %v323 = vsel %vm318, %v313, 0
      %v325 = vsel %vm318, %v309, 0
      %327 = vmatpush.msra.mxu0 0.0
      %328 = vmatpush.msra.mxu0 0.0
      %329 = vmatpush.msra.mxu0 0.0
      %330 = vmatpush.msra.mxu0 0.0
      %331 = vmatpush.msra.mxu0 0.0
      %332 = vmatpush.msra.mxu0 0.0
      %333 = vmatpush.msra.mxu0 0.0
      %334 = vmatpush.msra.mxu0 0.0
      %335 = vmatpush.msra.mxu0 0.0
      %336 = vmatpush.msra.mxu0 0.0
      %337 = vmatpush.msra.mxu0 0.0
      %338 = vmatpush.msra.mxu0 0.0
      %339 = vmatpush.msra.mxu0 0.0
      %340 = vmatpush.msra.mxu0 0.0
      %341 = vmatpush.msra.mxu0 0.0
      %342 = vmatpush.msra.mxu0 %v319
      %343 = vmatmul.f32.gmra.mxu0 %v316
      %v344 = vpop.f32.mrf.mxu0
      %v345 = vadd.f32 0.0, %v344
      %346 = vdwg.mxu0
      %347 = vmatpush.msra.mxu0 0.0
      %348 = vmatpush.msra.mxu0 0.0
      %349 = vmatpush.msra.mxu0 0.0
      %350 = vmatpush.msra.mxu0 0.0
      %351 = vmatpush.msra.mxu0 0.0
      %352 = vmatpush.msra.mxu0 0.0
      %353 = vmatpush.msra.mxu0 0.0
      %354 = vmatpush.msra.mxu0 0.0
      %355 = vmatpush.msra.mxu0 0.0
      %356 = vmatpush.msra.mxu0 0.0
      %357 = vmatpush.msra.mxu0 0.0
      %358 = vmatpush.msra.mxu0 0.0
      %359 = vmatpush.msra.mxu0 0.0
      %360 = vmatpush.msra.mxu0 0.0
      %361 = vmatpush.msra.mxu0 0.0
      %362 = vmatpush.msra.mxu0 %v321
      %363 = vmatmul.f32.gmra.mxu0 %v316
      %v364 = vpop.f32.mrf.mxu0
      %v365 = vadd.f32 0.0, %v364
      %366 = vdwg.mxu0
      %367 = vmatpush.msra.mxu0 0.0
      %368 = vmatpush.msra.mxu0 0.0
      %369 = vmatpush.msra.mxu0 0.0
      %370 = vmatpush.msra.mxu0 0.0
      %371 = vmatpush.msra.mxu0 0.0
      %372 = vmatpush.msra.mxu0 0.0
      %373 = vmatpush.msra.mxu0 0.0
      %374 = vmatpush.msra.mxu0 0.0
      %375 = vmatpush.msra.mxu0 0.0
      %376 = vmatpush.msra.mxu0 0.0
      %377 = vmatpush.msra.mxu0 0.0
      %378 = vmatpush.msra.mxu0 0.0
      %379 = vmatpush.msra.mxu0 0.0
      %380 = vmatpush.msra.mxu0 0.0
      %381 = vmatpush.msra.mxu0 0.0
      %382 = vmatpush.msra.mxu0 %v323
      %383 = vmatmul.f32.gmra.mxu0 %v316
      %v384 = vpop.f32.mrf.mxu0
      %v385 = vadd.f32 0.0, %v384
      %386 = vdwg.mxu0
      %387 = vmatpush.msra.mxu0 0.0
      %388 = vmatpush.msra.mxu0 0.0
      %389 = vmatpush.msra.mxu0 0.0
      %390 = vmatpush.msra.mxu0 0.0
      %391 = vmatpush.msra.mxu0 0.0
      %392 = vmatpush.msra.mxu0 0.0
      %393 = vmatpush.msra.mxu0 0.0
      %394 = vmatpush.msra.mxu0 0.0
      %395 = vmatpush.msra.mxu0 0.0
      %396 = vmatpush.msra.mxu0 0.0
      %397 = vmatpush.msra.mxu0 0.0
      %398 = vmatpush.msra.mxu0 0.0
      %399 = vmatpush.msra.mxu0 0.0
      %400 = vmatpush.msra.mxu0 0.0
      %401 = vmatpush.msra.mxu0 0.0
      %402 = vmatpush.msra.mxu0 %v325
      %403 = vmatmul.f32.gmra.mxu0 %v316
      %v404 = vpop.f32.mrf.mxu0
      %v405 = vadd.f32 0.0, %v404
      %406 = vdwg.mxu0
      %407 = vst [vmem:[#allocation1] ss:$2 sm:$0xff] %v289
      %s408 = scalar_lea.vmem [#allocation1], 16
      %409 = vst [vmem:[%s408] ss:$2 sm:$0xff] %v290
      %v410 = vld.sshfl [vmem:[#allocation1] sm:$0xff pattern:$0x75316420]
      %v411 = vld.sshfl [vmem:[#allocation1 + $0x8] sm:$0xff pattern:$0x75316420]
      %v412 = vld.sshfl [vmem:[#allocation1 + $0x10] sm:$0xff pattern:$0x75316420]
      %v413 = vld.sshfl [vmem:[#allocation1 + $0x18] sm:$0xff pattern:$0x75316420]
      %v415 = vsel %vm314, %v288, 0
      %v417 = vsel %vm318, %v410, 0
      %v419 = vsel %vm318, %v411, 0
      %v421 = vsel %vm318, %v412, 0
      %v423 = vsel %vm318, %v413, 0
      %425 = vmatpush.msra.mxu0 0.0
      %426 = vmatpush.msra.mxu0 0.0
      %427 = vmatpush.msra.mxu0 0.0
      %428 = vmatpush.msra.mxu0 0.0
      %429 = vmatpush.msra.mxu0 0.0
      %430 = vmatpush.msra.mxu0 0.0
      %431 = vmatpush.msra.mxu0 0.0
      %432 = vmatpush.msra.mxu0 0.0
      %433 = vmatpush.msra.mxu0 0.0
      %434 = vmatpush.msra.mxu0 0.0
      %435 = vmatpush.msra.mxu0 0.0
      %436 = vmatpush.msra.mxu0 0.0
      %437 = vmatpush.msra.mxu0 0.0
      %438 = vmatpush.msra.mxu0 0.0
      %439 = vmatpush.msra.mxu0 0.0
      %440 = vmatpush.msra.mxu0 %v417
      %441 = vmatmul.f32.gmra.mxu0 %v415
      %v442 = vpop.f32.mrf.mxu0
      %v443 = vadd.f32 %v345, %v442
      %444 = vdwg.mxu0
      %445 = vmatpush.msra.mxu0 0.0
      %446 = vmatpush.msra.mxu0 0.0
      %447 = vmatpush.msra.mxu0 0.0
      %448 = vmatpush.msra.mxu0 0.0
      %449 = vmatpush.msra.mxu0 0.0
      %450 = vmatpush.msra.mxu0 0.0
      %451 = vmatpush.msra.mxu0 0.0
      %452 = vmatpush.msra.mxu0 0.0
      %453 = vmatpush.msra.mxu0 0.0
      %454 = vmatpush.msra.mxu0 0.0
      %455 = vmatpush.msra.mxu0 0.0
      %456 = vmatpush.msra.mxu0 0.0
      %457 = vmatpush.msra.mxu0 0.0
      %458 = vmatpush.msra.mxu0 0.0
      %459 = vmatpush.msra.mxu0 0.0
      %460 = vmatpush.msra.mxu0 %v419
      %461 = vmatmul.f32.gmra.mxu0 %v415
      %v462 = vpop.f32.mrf.mxu0
      %v463 = vadd.f32 %v365, %v462
      %464 = vdwg.mxu0
      %465 = vmatpush.msra.mxu0 0.0
      %466 = vmatpush.msra.mxu0 0.0
      %467 = vmatpush.msra.mxu0 0.0
      %468 = vmatpush.msra.mxu0 0.0
      %469 = vmatpush.msra.mxu0 0.0
      %470 = vmatpush.msra.mxu0 0.0
      %471 = vmatpush.msra.mxu0 0.0
      %472 = vmatpush.msra.mxu0 0.0
      %473 = vmatpush.msra.mxu0 0.0
      %474 = vmatpush.msra.mxu0 0.0
      %475 = vmatpush.msra.mxu0 0.0
      %476 = vmatpush.msra.mxu0 0.0
      %477 = vmatpush.msra.mxu0 0.0
      %478 = vmatpush.msra.mxu0 0.0
      %479 = vmatpush.msra.mxu0 0.0
      %480 = vmatpush.msra.mxu0 %v421
      %481 = vmatmul.f32.gmra.mxu0 %v415
      %v482 = vpop.f32.mrf.mxu0
      %v483 = vadd.f32 %v385, %v482
      %484 = vdwg.mxu0
      %485 = vmatpush.msra.mxu0 0.0
      %486 = vmatpush.msra.mxu0 0.0
      %487 = vmatpush.msra.mxu0 0.0
      %488 = vmatpush.msra.mxu0 0.0
      %489 = vmatpush.msra.mxu0 0.0
      %490 = vmatpush.msra.mxu0 0.0
      %491 = vmatpush.msra.mxu0 0.0
      %492 = vmatpush.msra.mxu0 0.0
      %493 = vmatpush.msra.mxu0 0.0
      %494 = vmatpush.msra.mxu0 0.0
      %495 = vmatpush.msra.mxu0 0.0
      %496 = vmatpush.msra.mxu0 0.0
      %497 = vmatpush.msra.mxu0 0.0
      %498 = vmatpush.msra.mxu0 0.0
      %499 = vmatpush.msra.mxu0 0.0
      %500 = vmatpush.msra.mxu0 %v423
      %501 = vmatmul.f32.gmra.mxu0 %v415
      %v502 = vpop.f32.mrf.mxu0
      %v503 = vadd.f32 %v405, %v502
      %504 = vdwg.mxu0
      %s505 = scalar_lea.vmem %s1, 16
      %v506 = vld [vmem:[%s505] sm:$0xff]
      %v507 = vld [vmem:[%s278] sm:$0xff]
      %v508 = vld [vmem:[%s278 + $0x8] sm:$0xff]
      %511 = vst [vmem:[#allocation1] ss:$2 sm:$0xff] %v507
      %s512 = scalar_lea.vmem [#allocation1], 16
      %513 = vst [vmem:[%s512] ss:$2 sm:$0xff] %v508
      %v514 = vld.sshfl [vmem:[#allocation1] sm:$0xff pattern:$0x75316420]
      %v515 = vld.sshfl [vmem:[#allocation1 + $0x8] sm:$0xff pattern:$0x75316420]
      %v516 = vld.sshfl [vmem:[#allocation1 + $0x10] sm:$0xff pattern:$0x75316420]
      %v517 = vld.sshfl [vmem:[#allocation1 + $0x18] sm:$0xff pattern:$0x75316420]
      %518 = vrot.lane.b32.xlu0 %v514, 126
      %v519 = vpop.permute.xlu0 %518
      %520 = vrot.lane.b32.xlu0 %v515, 126
      %v521 = vpop.permute.xlu0 %520
      %522 = vrot.lane.b32.xlu0 %v516, 126
      %v523 = vpop.permute.xlu0 %522
      %524 = vrot.lane.b32.xlu0 %v517, 126
      %v525 = vpop.permute.xlu0 %524
      %vm526 = vcmask 1031168
      %v527 = vsel %vm526, %v519, %v521
      %v528 = vsel %vm526, %v521, %v523
      %v529 = vsel %vm526, %v523, %v525
      %v531 = vsel %vm314, %v506, 0
      %v533 = vsel %vm318, %v527, 0
      %v535 = vsel %vm318, %v528, 0
      %v537 = vsel %vm318, %v529, 0
      %v539 = vsel %vm318, %v525, 0
      %541 = vmatpush.msra.mxu0 0.0
      %542 = vmatpush.msra.mxu0 0.0
      %543 = vmatpush.msra.mxu0 0.0
      %544 = vmatpush.msra.mxu0 0.0
      %545 = vmatpush.msra.mxu0 0.0
      %546 = vmatpush.msra.mxu0 0.0
      %547 = vmatpush.msra.mxu0 0.0
      %548 = vmatpush.msra.mxu0 0.0
      %549 = vmatpush.msra.mxu0 0.0
      %550 = vmatpush.msra.mxu0 0.0
      %551 = vmatpush.msra.mxu0 0.0
      %552 = vmatpush.msra.mxu0 0.0
      %553 = vmatpush.msra.mxu0 0.0
      %554 = vmatpush.msra.mxu0 0.0
      %555 = vmatpush.msra.mxu0 0.0
      %556 = vmatpush.msra.mxu0 %v533
      %557 = vmatmul.f32.gmra.mxu0 %v531
      %v558 = vpop.f32.mrf.mxu0
      %v559 = vadd.f32 0.0, %v558
      %560 = vdwg.mxu0
      %561 = vmatpush.msra.mxu0 0.0
      %562 = vmatpush.msra.mxu0 0.0
      %563 = vmatpush.msra.mxu0 0.0
      %564 = vmatpush.msra.mxu0 0.0
      %565 = vmatpush.msra.mxu0 0.0
      %566 = vmatpush.msra.mxu0 0.0
      %567 = vmatpush.msra.mxu0 0.0
      %568 = vmatpush.msra.mxu0 0.0
      %569 = vmatpush.msra.mxu0 0.0
      %570 = vmatpush.msra.mxu0 0.0
      %571 = vmatpush.msra.mxu0 0.0
      %572 = vmatpush.msra.mxu0 0.0
      %573 = vmatpush.msra.mxu0 0.0
      %574 = vmatpush.msra.mxu0 0.0
      %575 = vmatpush.msra.mxu0 0.0
      %576 = vmatpush.msra.mxu0 %v535
      %577 = vmatmul.f32.gmra.mxu0 %v531
      %v578 = vpop.f32.mrf.mxu0
      %v579 = vadd.f32 0.0, %v578
      %580 = vdwg.mxu0
      %581 = vmatpush.msra.mxu0 0.0
      %582 = vmatpush.msra.mxu0 0.0
      %583 = vmatpush.msra.mxu0 0.0
      %584 = vmatpush.msra.mxu0 0.0
      %585 = vmatpush.msra.mxu0 0.0
      %586 = vmatpush.msra.mxu0 0.0
      %587 = vmatpush.msra.mxu0 0.0
      %588 = vmatpush.msra.mxu0 0.0
      %589 = vmatpush.msra.mxu0 0.0
      %590 = vmatpush.msra.mxu0 0.0
      %591 = vmatpush.msra.mxu0 0.0
      %592 = vmatpush.msra.mxu0 0.0
      %593 = vmatpush.msra.mxu0 0.0
      %594 = vmatpush.msra.mxu0 0.0
      %595 = vmatpush.msra.mxu0 0.0
      %596 = vmatpush.msra.mxu0 %v537
      %597 = vmatmul.f32.gmra.mxu0 %v531
      %v598 = vpop.f32.mrf.mxu0
      %v599 = vadd.f32 0.0, %v598
      %600 = vdwg.mxu0
      %601 = vmatpush.msra.mxu0 0.0
      %602 = vmatpush.msra.mxu0 0.0
      %603 = vmatpush.msra.mxu0 0.0
      %604 = vmatpush.msra.mxu0 0.0
      %605 = vmatpush.msra.mxu0 0.0
      %606 = vmatpush.msra.mxu0 0.0
      %607 = vmatpush.msra.mxu0 0.0
      %608 = vmatpush.msra.mxu0 0.0
      %609 = vmatpush.msra.mxu0 0.0
      %610 = vmatpush.msra.mxu0 0.0
      %611 = vmatpush.msra.mxu0 0.0
      %612 = vmatpush.msra.mxu0 0.0
      %613 = vmatpush.msra.mxu0 0.0
      %614 = vmatpush.msra.mxu0 0.0
      %615 = vmatpush.msra.mxu0 0.0
      %616 = vmatpush.msra.mxu0 %v539
      %617 = vmatmul.f32.gmra.mxu0 %v531
      %v618 = vpop.f32.mrf.mxu0
      %v619 = vadd.f32 0.0, %v618
      %620 = vdwg.mxu0
      %v621 = vadd.f32 %v443, %v559
      %v622 = vadd.f32 %v463, %v579
      %v623 = vadd.f32 %v483, %v599
      %v624 = vadd.f32 %v503, %v619
      %s625 = scalar_lea.vmem %s1, 24
      %v626 = vld [vmem:[%s625] sm:$0xff]
      %v627 = vld [vmem:[%s278] sm:$0xff]
      %v628 = vld [vmem:[%s278 + $0x8] sm:$0xff]
      %631 = vst [vmem:[#allocation1] ss:$2 sm:$0xff] %v627
      %s632 = scalar_lea.vmem [#allocation1], 16
      %633 = vst [vmem:[%s632] ss:$2 sm:$0xff] %v628
      %v634 = vld.sshfl [vmem:[#allocation1] sm:$0xff pattern:$0x75316420]
      %v635 = vld.sshfl [vmem:[#allocation1 + $0x8] sm:$0xff pattern:$0x75316420]
      %v636 = vld.sshfl [vmem:[#allocation1 + $0x10] sm:$0xff pattern:$0x75316420]
      %v637 = vld.sshfl [vmem:[#allocation1 + $0x18] sm:$0xff pattern:$0x75316420]
      %638 = vrot.lane.b32.xlu0 %v634, 108
      %v639 = vpop.permute.xlu0 %638
      %640 = vrot.lane.b32.xlu0 %v635, 108
      %v641 = vpop.permute.xlu0 %640
      %642 = vrot.lane.b32.xlu0 %v636, 108
      %v643 = vpop.permute.xlu0 %642
      %644 = vrot.lane.b32.xlu0 %v637, 108
      %v645 = vpop.permute.xlu0 %644
      %vm646 = vcmask 883712
      %v647 = vsel %vm646, %v639, %v641
      %v648 = vsel %vm646, %v641, %v643
      %v649 = vsel %vm646, %v643, %v645
      %v651 = vsel %vm314, %v626, 0
      %v653 = vsel %vm318, %v647, 0
      %v655 = vsel %vm318, %v648, 0
      %v657 = vsel %vm318, %v649, 0
      %v659 = vsel %vm318, %v645, 0
      %661 = vmatpush.msra.mxu0 0.0
      %662 = vmatpush.msra.mxu0 0.0
      %663 = vmatpush.msra.mxu0 0.0
      %664 = vmatpush.msra.mxu0 0.0
      %665 = vmatpush.msra.mxu0 0.0
      %666 = vmatpush.msra.mxu0 0.0
      %667 = vmatpush.msra.mxu0 0.0
      %668 = vmatpush.msra.mxu0 0.0
      %669 = vmatpush.msra.mxu0 0.0
      %670 = vmatpush.msra.mxu0 0.0
      %671 = vmatpush.msra.mxu0 0.0
      %672 = vmatpush.msra.mxu0 0.0
      %673 = vmatpush.msra.mxu0 0.0
      %674 = vmatpush.msra.mxu0 0.0
      %675 = vmatpush.msra.mxu0 0.0
      %676 = vmatpush.msra.mxu0 %v653
      %677 = vmatmul.f32.gmra.mxu0 %v651
      %v678 = vpop.f32.mrf.mxu0
      %v679 = vadd.f32 0.0, %v678
      %680 = vdwg.mxu0
      %681 = vmatpush.msra.mxu0 0.0
      %682 = vmatpush.msra.mxu0 0.0
      %683 = vmatpush.msra.mxu0 0.0
      %684 = vmatpush.msra.mxu0 0.0
      %685 = vmatpush.msra.mxu0 0.0
      %686 = vmatpush.msra.mxu0 0.0
      %687 = vmatpush.msra.mxu0 0.0
      %688 = vmatpush.msra.mxu0 0.0
      %689 = vmatpush.msra.mxu0 0.0
      %690 = vmatpush.msra.mxu0 0.0
      %691 = vmatpush.msra.mxu0 0.0
      %692 = vmatpush.msra.mxu0 0.0
      %693 = vmatpush.msra.mxu0 0.0
      %694 = vmatpush.msra.mxu0 0.0
      %695 = vmatpush.msra.mxu0 0.0
      %696 = vmatpush.msra.mxu0 %v655
      %697 = vmatmul.f32.gmra.mxu0 %v651
      %v698 = vpop.f32.mrf.mxu0
      %v699 = vadd.f32 0.0, %v698
      %700 = vdwg.mxu0
      %701 = vmatpush.msra.mxu0 0.0
      %702 = vmatpush.msra.mxu0 0.0
      %703 = vmatpush.msra.mxu0 0.0
      %704 = vmatpush.msra.mxu0 0.0
      %705 = vmatpush.msra.mxu0 0.0
      %706 = vmatpush.msra.mxu0 0.0
      %707 = vmatpush.msra.mxu0 0.0
      %708 = vmatpush.msra.mxu0 0.0
      %709 = vmatpush.msra.mxu0 0.0
      %710 = vmatpush.msra.mxu0 0.0
      %711 = vmatpush.msra.mxu0 0.0
      %712 = vmatpush.msra.mxu0 0.0
      %713 = vmatpush.msra.mxu0 0.0
      %714 = vmatpush.msra.mxu0 0.0
      %715 = vmatpush.msra.mxu0 0.0
      %716 = vmatpush.msra.mxu0 %v657
      %717 = vmatmul.f32.gmra.mxu0 %v651
      %v718 = vpop.f32.mrf.mxu0
      %v719 = vadd.f32 0.0, %v718
      %720 = vdwg.mxu0
      %721 = vmatpush.msra.mxu0 0.0
      %722 = vmatpush.msra.mxu0 0.0
      %723 = vmatpush.msra.mxu0 0.0
      %724 = vmatpush.msra.mxu0 0.0
      %725 = vmatpush.msra.mxu0 0.0
      %726 = vmatpush.msra.mxu0 0.0
      %727 = vmatpush.msra.mxu0 0.0
      %728 = vmatpush.msra.mxu0 0.0
      %729 = vmatpush.msra.mxu0 0.0
      %730 = vmatpush.msra.mxu0 0.0
      %731 = vmatpush.msra.mxu0 0.0
      %732 = vmatpush.msra.mxu0 0.0
      %733 = vmatpush.msra.mxu0 0.0
      %734 = vmatpush.msra.mxu0 0.0
      %735 = vmatpush.msra.mxu0 0.0
      %736 = vmatpush.msra.mxu0 %v659
      %737 = vmatmul.f32.gmra.mxu0 %v651
      %v738 = vpop.f32.mrf.mxu0
      %v739 = vadd.f32 0.0, %v738
      %740 = vdwg.mxu0
      %v741 = vadd.f32 %v621, %v679
      %v742 = vadd.f32 %v622, %v699
      %v743 = vadd.f32 %v623, %v719
      %v744 = vadd.f32 %v624, %v739
      %s745 = scalar_lea.vmem %s1, 32
      %v746 = vld [vmem:[%s745] sm:$0xff]
      %v747 = vld [vmem:[%s278] sm:$0xff]
      %v748 = vld [vmem:[%s278 + $0x8] sm:$0xff]
      %751 = vst [vmem:[#allocation1] ss:$2 sm:$0xff] %v747
      %s752 = scalar_lea.vmem [#allocation1], 16
      %753 = vst [vmem:[%s752] ss:$2 sm:$0xff] %v748
      %v754 = vld.sshfl [vmem:[#allocation1] sm:$0xff pattern:$0x75316420]
      %v755 = vld.sshfl [vmem:[#allocation1 + $0x8] sm:$0xff pattern:$0x75316420]
      %v756 = vld.sshfl [vmem:[#allocation1 + $0x10] sm:$0xff pattern:$0x75316420]
      %v757 = vld.sshfl [vmem:[#allocation1 + $0x18] sm:$0xff pattern:$0x75316420]
      %758 = vrot.lane.b32.xlu0 %v754, 107
      %v759 = vpop.permute.xlu0 %758
      %760 = vrot.lane.b32.xlu0 %v755, 107
      %v761 = vpop.permute.xlu0 %760
      %762 = vrot.lane.b32.xlu0 %v756, 107
      %v763 = vpop.permute.xlu0 %762
      %764 = vrot.lane.b32.xlu0 %v757, 107
      %v765 = vpop.permute.xlu0 %764
      %vm766 = vcmask 875520
      %v767 = vsel %vm766, %v759, %v761
      %v768 = vsel %vm766, %v761, %v763
      %v769 = vsel %vm766, %v763, %v765
      %v771 = vsel %vm314, %v746, 0
      %v773 = vsel %vm318, %v767, 0
      %v775 = vsel %vm318, %v768, 0
      %v777 = vsel %vm318, %v769, 0
      %v779 = vsel %vm318, %v765, 0
      %781 = vmatpush.msra.mxu0 0.0
      %782 = vmatpush.msra.mxu0 0.0
      %783 = vmatpush.msra.mxu0 0.0
      %784 = vmatpush.msra.mxu0 0.0
      %785 = vmatpush.msra.mxu0 0.0
      %786 = vmatpush.msra.mxu0 0.0
      %787 = vmatpush.msra.mxu0 0.0
      %788 = vmatpush.msra.mxu0 0.0
      %789 = vmatpush.msra.mxu0 0.0
      %790 = vmatpush.msra.mxu0 0.0
      %791 = vmatpush.msra.mxu0 0.0
      %792 = vmatpush.msra.mxu0 0.0
      %793 = vmatpush.msra.mxu0 0.0
      %794 = vmatpush.msra.mxu0 0.0
      %795 = vmatpush.msra.mxu0 0.0
      %796 = vmatpush.msra.mxu0 %v773
      %797 = vmatmul.f32.gmra.mxu0 %v771
      %v798 = vpop.f32.mrf.mxu0
      %v799 = vadd.f32 0.0, %v798
      %800 = vdwg.mxu0
      %801 = vmatpush.msra.mxu0 0.0
      %802 = vmatpush.msra.mxu0 0.0
      %803 = vmatpush.msra.mxu0 0.0
      %804 = vmatpush.msra.mxu0 0.0
      %805 = vmatpush.msra.mxu0 0.0
      %806 = vmatpush.msra.mxu0 0.0
      %807 = vmatpush.msra.mxu0 0.0
      %808 = vmatpush.msra.mxu0 0.0
      %809 = vmatpush.msra.mxu0 0.0
      %810 = vmatpush.msra.mxu0 0.0
      %811 = vmatpush.msra.mxu0 0.0
      %812 = vmatpush.msra.mxu0 0.0
      %813 = vmatpush.msra.mxu0 0.0
      %814 = vmatpush.msra.mxu0 0.0
      %815 = vmatpush.msra.mxu0 0.0
      %816 = vmatpush.msra.mxu0 %v775
      %817 = vmatmul.f32.gmra.mxu0 %v771
      %v818 = vpop.f32.mrf.mxu0
      %v819 = vadd.f32 0.0, %v818
      %820 = vdwg.mxu0
      %821 = vmatpush.msra.mxu0 0.0
      %822 = vmatpush.msra.mxu0 0.0
      %823 = vmatpush.msra.mxu0 0.0
      %824 = vmatpush.msra.mxu0 0.0
      %825 = vmatpush.msra.mxu0 0.0
      %826 = vmatpush.msra.mxu0 0.0
      %827 = vmatpush.msra.mxu0 0.0
      %828 = vmatpush.msra.mxu0 0.0
      %829 = vmatpush.msra.mxu0 0.0
      %830 = vmatpush.msra.mxu0 0.0
      %831 = vmatpush.msra.mxu0 0.0
      %832 = vmatpush.msra.mxu0 0.0
      %833 = vmatpush.msra.mxu0 0.0
      %834 = vmatpush.msra.mxu0 0.0
      %835 = vmatpush.msra.mxu0 0.0
      %836 = vmatpush.msra.mxu0 %v777
      %837 = vmatmul.f32.gmra.mxu0 %v771
      %v838 = vpop.f32.mrf.mxu0
      %v839 = vadd.f32 0.0, %v838
      %840 = vdwg.mxu0
      %841 = vmatpush.msra.mxu0 0.0
      %842 = vmatpush.msra.mxu0 0.0
      %843 = vmatpush.msra.mxu0 0.0
      %844 = vmatpush.msra.mxu0 0.0
      %845 = vmatpush.msra.mxu0 0.0
      %846 = vmatpush.msra.mxu0 0.0
      %847 = vmatpush.msra.mxu0 0.0
      %848 = vmatpush.msra.mxu0 0.0
      %849 = vmatpush.msra.mxu0 0.0
      %850 = vmatpush.msra.mxu0 0.0
      %851 = vmatpush.msra.mxu0 0.0
      %852 = vmatpush.msra.mxu0 0.0
      %853 = vmatpush.msra.mxu0 0.0
      %854 = vmatpush.msra.mxu0 0.0
      %855 = vmatpush.msra.mxu0 0.0
      %856 = vmatpush.msra.mxu0 %v779
      %857 = vmatmul.f32.gmra.mxu0 %v771
      %v858 = vpop.f32.mrf.mxu0
      %v859 = vadd.f32 0.0, %v858
      %860 = vdwg.mxu0
      %v861 = vadd.f32 %v741, %v799
      %v862 = vadd.f32 %v742, %v819
      %v863 = vadd.f32 %v743, %v839
      %v864 = vadd.f32 %v744, %v859
      %s865 = scalar_lea.vmem %s1, 40
      %v866 = vld [vmem:[%s865] sm:$0xff]
      %v867 = vld [vmem:[%s278] sm:$0xff]
      %v868 = vld [vmem:[%s278 + $0x8] sm:$0xff]
      %871 = vst [vmem:[#allocation1] ss:$2 sm:$0xff] %v867
      %s872 = scalar_lea.vmem [#allocation1], 16
      %873 = vst [vmem:[%s872] ss:$2 sm:$0xff] %v868
      %v874 = vld.sshfl [vmem:[#allocation1] sm:$0xff pattern:$0x75316420]
      %v875 = vld.sshfl [vmem:[#allocation1 + $0x8] sm:$0xff pattern:$0x75316420]
      %v876 = vld.sshfl [vmem:[#allocation1 + $0x10] sm:$0xff pattern:$0x75316420]
      %v877 = vld.sshfl [vmem:[#allocation1 + $0x18] sm:$0xff pattern:$0x75316420]
      %878 = vrot.lane.b32.xlu0 %v874, 106
      %v879 = vpop.permute.xlu0 %878
      %880 = vrot.lane.b32.xlu0 %v875, 106
      %v881 = vpop.permute.xlu0 %880
      %882 = vrot.lane.b32.xlu0 %v876, 106
      %v883 = vpop.permute.xlu0 %882
      %884 = vrot.lane.b32.xlu0 %v877, 106
      %v885 = vpop.permute.xlu0 %884
      %vm886 = vcmask 867328
      %v887 = vsel %vm886, %v879, %v881
      %v888 = vsel %vm886, %v881, %v883
      %v889 = vsel %vm886, %v883, %v885
      %v891 = vsel %vm314, %v866, 0
      %v893 = vsel %vm318, %v887, 0
      %v895 = vsel %vm318, %v888, 0
      %v897 = vsel %vm318, %v889, 0
      %v899 = vsel %vm318, %v885, 0
      %901 = vmatpush.msra.mxu0 0.0
      %902 = vmatpush.msra.mxu0 0.0
      %903 = vmatpush.msra.mxu0 0.0
      %904 = vmatpush.msra.mxu0 0.0
      %905 = vmatpush.msra.mxu0 0.0
      %906 = vmatpush.msra.mxu0 0.0
      %907 = vmatpush.msra.mxu0 0.0
      %908 = vmatpush.msra.mxu0 0.0
      %909 = vmatpush.msra.mxu0 0.0
      %910 = vmatpush.msra.mxu0 0.0
      %911 = vmatpush.msra.mxu0 0.0
      %912 = vmatpush.msra.mxu0 0.0
      %913 = vmatpush.msra.mxu0 0.0
      %914 = vmatpush.msra.mxu0 0.0
      %915 = vmatpush.msra.mxu0 0.0
      %916 = vmatpush.msra.mxu0 %v893
      %917 = vmatmul.f32.gmra.mxu0 %v891
      %v918 = vpop.f32.mrf.mxu0
      %v919 = vadd.f32 0.0, %v918
      %920 = vdwg.mxu0
      %921 = vmatpush.msra.mxu0 0.0
      %922 = vmatpush.msra.mxu0 0.0
      %923 = vmatpush.msra.mxu0 0.0
      %924 = vmatpush.msra.mxu0 0.0
      %925 = vmatpush.msra.mxu0 0.0
      %926 = vmatpush.msra.mxu0 0.0
      %927 = vmatpush.msra.mxu0 0.0
      %928 = vmatpush.msra.mxu0 0.0
      %929 = vmatpush.msra.mxu0 0.0
      %930 = vmatpush.msra.mxu0 0.0
      %931 = vmatpush.msra.mxu0 0.0
      %932 = vmatpush.msra.mxu0 0.0
      %933 = vmatpush.msra.mxu0 0.0
      %934 = vmatpush.msra.mxu0 0.0
      %935 = vmatpush.msra.mxu0 0.0
      %936 = vmatpush.msra.mxu0 %v895
      %937 = vmatmul.f32.gmra.mxu0 %v891
      %v938 = vpop.f32.mrf.mxu0
      %v939 = vadd.f32 0.0, %v938
      %940 = vdwg.mxu0
      %941 = vmatpush.msra.mxu0 0.0
      %942 = vmatpush.msra.mxu0 0.0
      %943 = vmatpush.msra.mxu0 0.0
      %944 = vmatpush.msra.mxu0 0.0
      %945 = vmatpush.msra.mxu0 0.0
      %946 = vmatpush.msra.mxu0 0.0
      %947 = vmatpush.msra.mxu0 0.0
      %948 = vmatpush.msra.mxu0 0.0
      %949 = vmatpush.msra.mxu0 0.0
      %950 = vmatpush.msra.mxu0 0.0
      %951 = vmatpush.msra.mxu0 0.0
      %952 = vmatpush.msra.mxu0 0.0
      %953 = vmatpush.msra.mxu0 0.0
      %954 = vmatpush.msra.mxu0 0.0
      %955 = vmatpush.msra.mxu0 0.0
      %956 = vmatpush.msra.mxu0 %v897
      %957 = vmatmul.f32.gmra.mxu0 %v891
      %v958 = vpop.f32.mrf.mxu0
      %v959 = vadd.f32 0.0, %v958
      %960 = vdwg.mxu0
      %961 = vmatpush.msra.mxu0 0.0
      %962 = vmatpush.msra.mxu0 0.0
      %963 = vmatpush.msra.mxu0 0.0
      %964 = vmatpush.msra.mxu0 0.0
      %965 = vmatpush.msra.mxu0 0.0
      %966 = vmatpush.msra.mxu0 0.0
      %967 = vmatpush.msra.mxu0 0.0
      %968 = vmatpush.msra.mxu0 0.0
      %969 = vmatpush.msra.mxu0 0.0
      %970 = vmatpush.msra.mxu0 0.0
      %971 = vmatpush.msra.mxu0 0.0
      %972 = vmatpush.msra.mxu0 0.0
      %973 = vmatpush.msra.mxu0 0.0
      %974 = vmatpush.msra.mxu0 0.0
      %975 = vmatpush.msra.mxu0 0.0
      %976 = vmatpush.msra.mxu0 %v899
      %977 = vmatmul.f32.gmra.mxu0 %v891
      %v978 = vpop.f32.mrf.mxu0
      %v979 = vadd.f32 0.0, %v978
      %980 = vdwg.mxu0
      %v981 = vadd.f32 %v861, %v919
      %v982 = vadd.f32 %v862, %v939
      %v983 = vadd.f32 %v863, %v959
      %v984 = vadd.f32 %v864, %v979
      %s985 = scalar_lea.vmem %s1, 48
      %v986 = vld [vmem:[%s985] sm:$0xff]
      %v987 = vld [vmem:[%s278] sm:$0xff]
      %v988 = vld [vmem:[%s278 + $0x8] sm:$0xff]
      %991 = vst [vmem:[#allocation1] ss:$2 sm:$0xff] %v987
      %s992 = scalar_lea.vmem [#allocation1], 16
      %993 = vst [vmem:[%s992] ss:$2 sm:$0xff] %v988
      %v994 = vld.sshfl [vmem:[#allocation1] sm:$0xff pattern:$0x75316420]
      %v995 = vld.sshfl [vmem:[#allocation1 + $0x8] sm:$0xff pattern:$0x75316420]
      %v996 = vld.sshfl [vmem:[#allocation1 + $0x10] sm:$0xff pattern:$0x75316420]
      %v997 = vld.sshfl [vmem:[#allocation1 + $0x18] sm:$0xff pattern:$0x75316420]
      %998 = vrot.lane.b32.xlu0 %v994, 88
      %v999 = vpop.permute.xlu0 %998
      %1000 = vrot.lane.b32.xlu0 %v995, 88
      %v1001 = vpop.permute.xlu0 %1000
      %1002 = vrot.lane.b32.xlu0 %v996, 88
      %v1003 = vpop.permute.xlu0 %1002
      %1004 = vrot.lane.b32.xlu0 %v997, 88
      %v1005 = vpop.permute.xlu0 %1004
      %vm1006 = vcmask 719872
      %v1007 = vsel %vm1006, %v999, %v1001
      %v1008 = vsel %vm1006, %v1001, %v1003
      %v1009 = vsel %vm1006, %v1003, %v1005
      %v1011 = vsel %vm314, %v986, 0
      %v1013 = vsel %vm318, %v1007, 0
      %v1015 = vsel %vm318, %v1008, 0
      %v1017 = vsel %vm318, %v1009, 0
      %v1019 = vsel %vm318, %v1005, 0
      %1021 = vmatpush.msra.mxu0 0.0
      %1022 = vmatpush.msra.mxu0 0.0
      %1023 = vmatpush.msra.mxu0 0.0
      %1024 = vmatpush.msra.mxu0 0.0
      %1025 = vmatpush.msra.mxu0 0.0
      %1026 = vmatpush.msra.mxu0 0.0
      %1027 = vmatpush.msra.mxu0 0.0
      %1028 = vmatpush.msra.mxu0 0.0
      %1029 = vmatpush.msra.mxu0 0.0
      %1030 = vmatpush.msra.mxu0 0.0
      %1031 = vmatpush.msra.mxu0 0.0
      %1032 = vmatpush.msra.mxu0 0.0
      %1033 = vmatpush.msra.mxu0 0.0
      %1034 = vmatpush.msra.mxu0 0.0
      %1035 = vmatpush.msra.mxu0 0.0
      %1036 = vmatpush.msra.mxu0 %v1013
      %1037 = vmatmul.f32.gmra.mxu0 %v1011
      %v1038 = vpop.f32.mrf.mxu0
      %v1039 = vadd.f32 0.0, %v1038
      %1040 = vdwg.mxu0
      %1041 = vmatpush.msra.mxu0 0.0
      %1042 = vmatpush.msra.mxu0 0.0
      %1043 = vmatpush.msra.mxu0 0.0
      %1044 = vmatpush.msra.mxu0 0.0
      %1045 = vmatpush.msra.mxu0 0.0
      %1046 = vmatpush.msra.mxu0 0.0
      %1047 = vmatpush.msra.mxu0 0.0
      %1048 = vmatpush.msra.mxu0 0.0
      %1049 = vmatpush.msra.mxu0 0.0
      %1050 = vmatpush.msra.mxu0 0.0
      %1051 = vmatpush.msra.mxu0 0.0
      %1052 = vmatpush.msra.mxu0 0.0
      %1053 = vmatpush.msra.mxu0 0.0
      %1054 = vmatpush.msra.mxu0 0.0
      %1055 = vmatpush.msra.mxu0 0.0
      %1056 = vmatpush.msra.mxu0 %v1015
      %1057 = vmatmul.f32.gmra.mxu0 %v1011
      %v1058 = vpop.f32.mrf.mxu0
      %v1059 = vadd.f32 0.0, %v1058
      %1060 = vdwg.mxu0
      %1061 = vmatpush.msra.mxu0 0.0
      %1062 = vmatpush.msra.mxu0 0.0
      %1063 = vmatpush.msra.mxu0 0.0
      %1064 = vmatpush.msra.mxu0 0.0
      %1065 = vmatpush.msra.mxu0 0.0
      %1066 = vmatpush.msra.mxu0 0.0
      %1067 = vmatpush.msra.mxu0 0.0
      %1068 = vmatpush.msra.mxu0 0.0
      %1069 = vmatpush.msra.mxu0 0.0
      %1070 = vmatpush.msra.mxu0 0.0
      %1071 = vmatpush.msra.mxu0 0.0
      %1072 = vmatpush.msra.mxu0 0.0
      %1073 = vmatpush.msra.mxu0 0.0
      %1074 = vmatpush.msra.mxu0 0.0
      %1075 = vmatpush.msra.mxu0 0.0
      %1076 = vmatpush.msra.mxu0 %v1017
      %1077 = vmatmul.f32.gmra.mxu0 %v1011
      %v1078 = vpop.f32.mrf.mxu0
      %v1079 = vadd.f32 0.0, %v1078
      %1080 = vdwg.mxu0
      %1081 = vmatpush.msra.mxu0 0.0
      %1082 = vmatpush.msra.mxu0 0.0
      %1083 = vmatpush.msra.mxu0 0.0
      %1084 = vmatpush.msra.mxu0 0.0
      %1085 = vmatpush.msra.mxu0 0.0
      %1086 = vmatpush.msra.mxu0 0.0
      %1087 = vmatpush.msra.mxu0 0.0
      %1088 = vmatpush.msra.mxu0 0.0
      %1089 = vmatpush.msra.mxu0 0.0
      %1090 = vmatpush.msra.mxu0 0.0
      %1091 = vmatpush.msra.mxu0 0.0
      %1092 = vmatpush.msra.mxu0 0.0
      %1093 = vmatpush.msra.mxu0 0.0
      %1094 = vmatpush.msra.mxu0 0.0
      %1095 = vmatpush.msra.mxu0 0.0
      %1096 = vmatpush.msra.mxu0 %v1019
      %1097 = vmatmul.f32.gmra.mxu0 %v1011
      %v1098 = vpop.f32.mrf.mxu0
      %v1099 = vadd.f32 0.0, %v1098
      %1100 = vdwg.mxu0
      %v1101 = vadd.f32 %v981, %v1039
      %v1102 = vadd.f32 %v982, %v1059
      %v1103 = vadd.f32 %v983, %v1079
      %v1104 = vadd.f32 %v984, %v1099
      %s1105 = scalar_lea.vmem %s1, 56
      %v1106 = vld [vmem:[%s1105] sm:$0xff]
      %v1107 = vld [vmem:[%s278] sm:$0xff]
      %v1108 = vld [vmem:[%s278 + $0x8] sm:$0xff]
      %1111 = vst [vmem:[#allocation1] ss:$2 sm:$0xff] %v1107
      %s1112 = scalar_lea.vmem [#allocation1], 16
      %1113 = vst [vmem:[%s1112] ss:$2 sm:$0xff] %v1108
      %v1114 = vld.sshfl [vmem:[#allocation1] sm:$0xff pattern:$0x75316420]
      %v1115 = vld.sshfl [vmem:[#allocation1 + $0x8] sm:$0xff pattern:$0x75316420]
      %v1116 = vld.sshfl [vmem:[#allocation1 + $0x10] sm:$0xff pattern:$0x75316420]
      %v1117 = vld.sshfl [vmem:[#allocation1 + $0x18] sm:$0xff pattern:$0x75316420]
      %1118 = vrot.lane.b32.xlu0 %v1114, 87
      %v1119 = vpop.permute.xlu0 %1118
      %1120 = vrot.lane.b32.xlu0 %v1115, 87
      %v1121 = vpop.permute.xlu0 %1120
      %1122 = vrot.lane.b32.xlu0 %v1116, 87
      %v1123 = vpop.permute.xlu0 %1122
      %1124 = vrot.lane.b32.xlu0 %v1117, 87
      %v1125 = vpop.permute.xlu0 %1124
      %vm1126 = vcmask 711680
      %v1127 = vsel %vm1126, %v1119, %v1121
      %v1128 = vsel %vm1126, %v1121, %v1123
      %v1129 = vsel %vm1126, %v1123, %v1125
      %v1131 = vsel %vm314, %v1106, 0
      %v1133 = vsel %vm318, %v1127, 0
      %v1135 = vsel %vm318, %v1128, 0
      %v1137 = vsel %vm318, %v1129, 0
      %v1139 = vsel %vm318, %v1125, 0
      %1141 = vmatpush.msra.mxu0 0.0
      %1142 = vmatpush.msra.mxu0 0.0
      %1143 = vmatpush.msra.mxu0 0.0
      %1144 = vmatpush.msra.mxu0 0.0
      %1145 = vmatpush.msra.mxu0 0.0
      %1146 = vmatpush.msra.mxu0 0.0
      %1147 = vmatpush.msra.mxu0 0.0
      %1148 = vmatpush.msra.mxu0 0.0
      %1149 = vmatpush.msra.mxu0 0.0
      %1150 = vmatpush.msra.mxu0 0.0
      %1151 = vmatpush.msra.mxu0 0.0
      %1152 = vmatpush.msra.mxu0 0.0
      %1153 = vmatpush.msra.mxu0 0.0
      %1154 = vmatpush.msra.mxu0 0.0
      %1155 = vmatpush.msra.mxu0 0.0
      %1156 = vmatpush.msra.mxu0 %v1133
      %1157 = vmatmul.f32.gmra.mxu0 %v1131
      %v1158 = vpop.f32.mrf.mxu0
      %v1159 = vadd.f32 0.0, %v1158
      %1160 = vdwg.mxu0
      %1161 = vmatpush.msra.mxu0 0.0
      %1162 = vmatpush.msra.mxu0 0.0
      %1163 = vmatpush.msra.mxu0 0.0
      %1164 = vmatpush.msra.mxu0 0.0
      %1165 = vmatpush.msra.mxu0 0.0
      %1166 = vmatpush.msra.mxu0 0.0
      %1167 = vmatpush.msra.mxu0 0.0
      %1168 = vmatpush.msra.mxu0 0.0
      %1169 = vmatpush.msra.mxu0 0.0
      %1170 = vmatpush.msra.mxu0 0.0
      %1171 = vmatpush.msra.mxu0 0.0
      %1172 = vmatpush.msra.mxu0 0.0
      %1173 = vmatpush.msra.mxu0 0.0
      %1174 = vmatpush.msra.mxu0 0.0
      %1175 = vmatpush.msra.mxu0 0.0
      %1176 = vmatpush.msra.mxu0 %v1135
      %1177 = vmatmul.f32.gmra.mxu0 %v1131
      %v1178 = vpop.f32.mrf.mxu0
      %v1179 = vadd.f32 0.0, %v1178
      %1180 = vdwg.mxu0
      %1181 = vmatpush.msra.mxu0 0.0
      %1182 = vmatpush.msra.mxu0 0.0
      %1183 = vmatpush.msra.mxu0 0.0
      %1184 = vmatpush.msra.mxu0 0.0
      %1185 = vmatpush.msra.mxu0 0.0
      %1186 = vmatpush.msra.mxu0 0.0
      %1187 = vmatpush.msra.mxu0 0.0
      %1188 = vmatpush.msra.mxu0 0.0
      %1189 = vmatpush.msra.mxu0 0.0
      %1190 = vmatpush.msra.mxu0 0.0
      %1191 = vmatpush.msra.mxu0 0.0
      %1192 = vmatpush.msra.mxu0 0.0
      %1193 = vmatpush.msra.mxu0 0.0
      %1194 = vmatpush.msra.mxu0 0.0
      %1195 = vmatpush.msra.mxu0 0.0
      %1196 = vmatpush.msra.mxu0 %v1137
      %1197 = vmatmul.f32.gmra.mxu0 %v1131
      %v1198 = vpop.f32.mrf.mxu0
      %v1199 = vadd.f32 0.0, %v1198
      %1200 = vdwg.mxu0
      %1201 = vmatpush.msra.mxu0 0.0
      %1202 = vmatpush.msra.mxu0 0.0
      %1203 = vmatpush.msra.mxu0 0.0
      %1204 = vmatpush.msra.mxu0 0.0
      %1205 = vmatpush.msra.mxu0 0.0
      %1206 = vmatpush.msra.mxu0 0.0
      %1207 = vmatpush.msra.mxu0 0.0
      %1208 = vmatpush.msra.mxu0 0.0
      %1209 = vmatpush.msra.mxu0 0.0
      %1210 = vmatpush.msra.mxu0 0.0
      %1211 = vmatpush.msra.mxu0 0.0
      %1212 = vmatpush.msra.mxu0 0.0
      %1213 = vmatpush.msra.mxu0 0.0
      %1214 = vmatpush.msra.mxu0 0.0
      %1215 = vmatpush.msra.mxu0 0.0
      %1216 = vmatpush.msra.mxu0 %v1139
      %1217 = vmatmul.f32.gmra.mxu0 %v1131
      %v1218 = vpop.f32.mrf.mxu0
      %v1219 = vadd.f32 0.0, %v1218
      %1220 = vdwg.mxu0
      %v1221 = vadd.f32 %v1101, %v1159
      %v1222 = vadd.f32 %v1102, %v1179
      %v1223 = vadd.f32 %v1103, %v1199
      %v1224 = vadd.f32 %v1104, %v1219
      %s1225 = scalar_lea.vmem %s1, 64
      %v1226 = vld [vmem:[%s1225] sm:$0xff]
      %v1227 = vld [vmem:[%s278] sm:$0xff]
      %v1228 = vld [vmem:[%s278 + $0x8] sm:$0xff]
      %1231 = vst [vmem:[#allocation1] ss:$2 sm:$0xff] %v1227
      %s1232 = scalar_lea.vmem [#allocation1], 16
      %1233 = vst [vmem:[%s1232] ss:$2 sm:$0xff] %v1228
      %v1234 = vld.sshfl [vmem:[#allocation1] sm:$0xff pattern:$0x75316420]
      %v1235 = vld.sshfl [vmem:[#allocation1 + $0x8] sm:$0xff pattern:$0x75316420]
      %v1236 = vld.sshfl [vmem:[#allocation1 + $0x10] sm:$0xff pattern:$0x75316420]
      %v1237 = vld.sshfl [vmem:[#allocation1 + $0x18] sm:$0xff pattern:$0x75316420]
      %1238 = vrot.lane.b32.xlu0 %v1234, 86
      %v1239 = vpop.permute.xlu0 %1238
      %1240 = vrot.lane.b32.xlu0 %v1235, 86
      %v1241 = vpop.permute.xlu0 %1240
      %1242 = vrot.lane.b32.xlu0 %v1236, 86
      %v1243 = vpop.permute.xlu0 %1242
      %1244 = vrot.lane.b32.xlu0 %v1237, 86
      %v1245 = vpop.permute.xlu0 %1244
      %vm1246 = vcmask 703488
      %v1247 = vsel %vm1246, %v1239, %v1241
      %v1248 = vsel %vm1246, %v1241, %v1243
      %v1249 = vsel %vm1246, %v1243, %v1245
      %v1251 = vsel %vm314, %v1226, 0
      %v1253 = vsel %vm318, %v1247, 0
      %v1255 = vsel %vm318, %v1248, 0
      %v1257 = vsel %vm318, %v1249, 0
      %v1259 = vsel %vm318, %v1245, 0
      %1261 = vmatpush.msra.mxu0 0.0
      %1262 = vmatpush.msra.mxu0 0.0
      %1263 = vmatpush.msra.mxu0 0.0
      %1264 = vmatpush.msra.mxu0 0.0
      %1265 = vmatpush.msra.mxu0 0.0
      %1266 = vmatpush.msra.mxu0 0.0
      %1267 = vmatpush.msra.mxu0 0.0
      %1268 = vmatpush.msra.mxu0 0.0
      %1269 = vmatpush.msra.mxu0 0.0
      %1270 = vmatpush.msra.mxu0 0.0
      %1271 = vmatpush.msra.mxu0 0.0
      %1272 = vmatpush.msra.mxu0 0.0
      %1273 = vmatpush.msra.mxu0 0.0
      %1274 = vmatpush.msra.mxu0 0.0
      %1275 = vmatpush.msra.mxu0 0.0
      %1276 = vmatpush.msra.mxu0 %v1253
      %1277 = vmatmul.f32.gmra.mxu0 %v1251
      %v1278 = vpop.f32.mrf.mxu0
      %v1279 = vadd.f32 0.0, %v1278
      %1280 = vdwg.mxu0
      %1281 = vmatpush.msra.mxu0 0.0
      %1282 = vmatpush.msra.mxu0 0.0
      %1283 = vmatpush.msra.mxu0 0.0
      %1284 = vmatpush.msra.mxu0 0.0
      %1285 = vmatpush.msra.mxu0 0.0
      %1286 = vmatpush.msra.mxu0 0.0
      %1287 = vmatpush.msra.mxu0 0.0
      %1288 = vmatpush.msra.mxu0 0.0
      %1289 = vmatpush.msra.mxu0 0.0
      %1290 = vmatpush.msra.mxu0 0.0
      %1291 = vmatpush.msra.mxu0 0.0
      %1292 = vmatpush.msra.mxu0 0.0
      %1293 = vmatpush.msra.mxu0 0.0
      %1294 = vmatpush.msra.mxu0 0.0
      %1295 = vmatpush.msra.mxu0 0.0
      %1296 = vmatpush.msra.mxu0 %v1255
      %1297 = vmatmul.f32.gmra.mxu0 %v1251
      %v1298 = vpop.f32.mrf.mxu0
      %v1299 = vadd.f32 0.0, %v1298
      %1300 = vdwg.mxu0
      %1301 = vmatpush.msra.mxu0 0.0
      %1302 = vmatpush.msra.mxu0 0.0
      %1303 = vmatpush.msra.mxu0 0.0
      %1304 = vmatpush.msra.mxu0 0.0
      %1305 = vmatpush.msra.mxu0 0.0
      %1306 = vmatpush.msra.mxu0 0.0
      %1307 = vmatpush.msra.mxu0 0.0
      %1308 = vmatpush.msra.mxu0 0.0
      %1309 = vmatpush.msra.mxu0 0.0
      %1310 = vmatpush.msra.mxu0 0.0
      %1311 = vmatpush.msra.mxu0 0.0
      %1312 = vmatpush.msra.mxu0 0.0
      %1313 = vmatpush.msra.mxu0 0.0
      %1314 = vmatpush.msra.mxu0 0.0
      %1315 = vmatpush.msra.mxu0 0.0
      %1316 = vmatpush.msra.mxu0 %v1257
      %1317 = vmatmul.f32.gmra.mxu0 %v1251
      %v1318 = vpop.f32.mrf.mxu0
      %v1319 = vadd.f32 0.0, %v1318
      %1320 = vdwg.mxu0
      %1321 = vmatpush.msra.mxu0 0.0
      %1322 = vmatpush.msra.mxu0 0.0
      %1323 = vmatpush.msra.mxu0 0.0
      %1324 = vmatpush.msra.mxu0 0.0
      %1325 = vmatpush.msra.mxu0 0.0
      %1326 = vmatpush.msra.mxu0 0.0
      %1327 = vmatpush.msra.mxu0 0.0
      %1328 = vmatpush.msra.mxu0 0.0
      %1329 = vmatpush.msra.mxu0 0.0
      %1330 = vmatpush.msra.mxu0 0.0
      %1331 = vmatpush.msra.mxu0 0.0
      %1332 = vmatpush.msra.mxu0 0.0
      %1333 = vmatpush.msra.mxu0 0.0
      %1334 = vmatpush.msra.mxu0 0.0
      %1335 = vmatpush.msra.mxu0 0.0
      %1336 = vmatpush.msra.mxu0 %v1259
      %1337 = vmatmul.f32.gmra.mxu0 %v1251
      %v1338 = vpop.f32.mrf.mxu0
      %v1339 = vadd.f32 0.0, %v1338
      %1340 = vdwg.mxu0
      %v1341 = vadd.f32 %v1221, %v1279
      %v1342 = vadd.f32 %v1222, %v1299
      %v1343 = vadd.f32 %v1223, %v1319
      %v1344 = vadd.f32 %v1224, %v1339
      %v1345 = vld [vmem:[%s2] sm:$0xff]
      %1347 = vset.pattern.permute.xlu0 0
      %1348 = vperm.xlu0 %1347, %v1345
      %v1349 = vpop.permute.xlu0 %1348
      %v1351 = vadd.f32 %v1341, %v1349
      %v1352 = vadd.f32 %v1342, %v1349
      %v1353 = vadd.f32 %v1343, %v1349
      %v1354 = vadd.f32 %v1344, %v1349
      %v1355 = vmul.f32 %v1351, 0.2
      %v1356 = vmul.f32 %v1352, 0.2
      %v1357 = vmul.f32 %v1353, 0.2
      %v1358 = vmul.f32 %v1354, 0.2
      %v1359 = vmax.f32 %v1351, %v1355
      %v1360 = vmax.f32 %v1352, %v1356
      %v1361 = vmax.f32 %v1353, %v1357
      %v1362 = vmax.f32 %v1354, %v1358
      %s1363 = smul.u32 %s22, 16
      %v1364 = vld [vmem:[%s5] ss:$2 sm:$0xf]
      %s1365 = ssub.s32 %s1363, 1
      %v1366 = vstv %s1365
      %v1367 = vadd.s32 %v1364, %v1366
      %s1368 = scalar_lea.vmem %s5, 1
      %v1369 = vld [vmem:[%s1368] ss:$2 sm:$0xf]
      %vm1370 = vcmp.ge.s32.totalorder %v1369, 1
      %vm1371 = vcmp.lt.s32.totalorder %v1369, 17
      %vm1372 = vmand %vm1370, %vm1371
      %vm1373 = vcmp.ge.s32.totalorder %v1367, 0
      %vm1374 = vmand %vm1372, %vm1373
      %vm1375 = vcmp.lt.s32.totalorder %v1367, 16
      %vm1376 = vmand %vm1374, %vm1375
      %v1377 = vsel %vm1376, 1, 0
      %v1378 = vperm.slane %v1377, 0
      %v1379 = vperm.slane %v1377, 1
      %v1380 = vperm.slane %v1377, 2
      %v1381 = vperm.slane %v1377, 3
      %vm1382 = vcmp.eq.s32.totalorder %v1378, 1
      %vm1383 = vcmp.eq.s32.totalorder %v1379, 1
      %vm1384 = vcmp.eq.s32.totalorder %v1380, 1
      %vm1385 = vcmp.eq.s32.totalorder %v1381, 1
      %v1386 = vsel %vm1382, %v1359, 0.0
      %v1387 = vsel %vm1383, %v1360, 0.0
      %v1388 = vsel %vm1384, %v1361, 0.0
      %v1389 = vsel %vm1385, %v1362, 0.0
      %v1390 = vld [vmem:[%s3] sm:$0xff]
      %s1391 = scalar_lea.vmem %s3, 8
      %v1392 = vld [vmem:[%s1391] sm:$0xff]
      %1397 = vrot.lane.b32.xlu0 %v1386, 127
      %v1398 = vpop.permute.xlu0 %1397
      %1399 = vrot.lane.b32.xlu0 %v1387, 127
      %v1400 = vpop.permute.xlu0 %1399
      %1401 = vrot.lane.b32.xlu0 %v1388, 127
      %v1402 = vpop.permute.xlu0 %1401
      %1403 = vrot.lane.b32.xlu0 %v1389, 127
      %v1404 = vpop.permute.xlu0 %1403
      %v1405 = vsel %vm310, %v1398, %v1400
      %v1406 = vsel %vm310, %v1400, %v1402
      %v1407 = vsel %vm310, %v1402, %v1404
      %vm1411 = vcmask 64512
      %v1413 = vsel %vm1411, %v1392, 0
      %1415 = vmatpush.msra.mxu0 0.0
      %1416 = vmatpush.msra.mxu0 0.0
      %1417 = vmatpush.msra.mxu0 0.0
      %1418 = vmatpush.msra.mxu0 0.0
      %1419 = vmatpush.msra.mxu0 0.0
      %1420 = vmatpush.msra.mxu0 0.0
      %1421 = vmatpush.msra.mxu0 0.0
      %1422 = vmatpush.msra.mxu0 0.0
      %1423 = vmatpush.msra.mxu0 0.0
      %1424 = vmatpush.msra.mxu0 0.0
      %1425 = vmatpush.msra.mxu0 0.0
      %1426 = vmatpush.msra.mxu0 0.0
      %1427 = vmatpush.msra.mxu0 0.0
      %1428 = vmatpush.msra.mxu0 0.0
      %1429 = vmatpush.msra.mxu0 0.0
      %1430 = vmatpush.msra.mxu0 %v1405
      %1431 = vmatmul.f32.gmra.mxu0 %v1413
      %v1432 = vpop.f32.mrf.mxu0
      %v1433 = vadd.f32 0.0, %v1432
      %1434 = vdwg.mxu0
      %1435 = vmatpush.msra.mxu0 0.0
      %1436 = vmatpush.msra.mxu0 0.0
      %1437 = vmatpush.msra.mxu0 0.0
      %1438 = vmatpush.msra.mxu0 0.0
      %1439 = vmatpush.msra.mxu0 0.0
      %1440 = vmatpush.msra.mxu0 0.0
      %1441 = vmatpush.msra.mxu0 0.0
      %1442 = vmatpush.msra.mxu0 0.0
      %1443 = vmatpush.msra.mxu0 0.0
      %1444 = vmatpush.msra.mxu0 0.0
      %1445 = vmatpush.msra.mxu0 0.0
      %1446 = vmatpush.msra.mxu0 0.0
      %1447 = vmatpush.msra.mxu0 0.0
      %1448 = vmatpush.msra.mxu0 0.0
      %1449 = vmatpush.msra.mxu0 0.0
      %1450 = vmatpush.msra.mxu0 %v1406
      %1451 = vmatmul.f32.gmra.mxu0 %v1413
      %v1452 = vpop.f32.mrf.mxu0
      %v1453 = vadd.f32 0.0, %v1452
      %1454 = vdwg.mxu0
      %1455 = vmatpush.msra.mxu0 0.0
      %1456 = vmatpush.msra.mxu0 0.0
      %1457 = vmatpush.msra.mxu0 0.0
      %1458 = vmatpush.msra.mxu0 0.0
      %1459 = vmatpush.msra.mxu0 0.0
      %1460 = vmatpush.msra.mxu0 0.0
      %1461 = vmatpush.msra.mxu0 0.0
      %1462 = vmatpush.msra.mxu0 0.0
      %1463 = vmatpush.msra.mxu0 0.0
      %1464 = vmatpush.msra.mxu0 0.0
      %1465 = vmatpush.msra.mxu0 0.0
      %1466 = vmatpush.msra.mxu0 0.0
      %1467 = vmatpush.msra.mxu0 0.0
      %1468 = vmatpush.msra.mxu0 0.0
      %1469 = vmatpush.msra.mxu0 0.0
      %1470 = vmatpush.msra.mxu0 %v1407
      %1471 = vmatmul.f32.gmra.mxu0 %v1413
      %v1472 = vpop.f32.mrf.mxu0
      %v1473 = vadd.f32 0.0, %v1472
      %1474 = vdwg.mxu0
      %v1476 = vsel %vm1411, %v1390, 0
      %1478 = vmatpush.msra.mxu0 0.0
      %1479 = vmatpush.msra.mxu0 0.0
      %1480 = vmatpush.msra.mxu0 0.0
      %1481 = vmatpush.msra.mxu0 0.0
      %1482 = vmatpush.msra.mxu0 0.0
      %1483 = vmatpush.msra.mxu0 0.0
      %1484 = vmatpush.msra.mxu0 0.0
      %1485 = vmatpush.msra.mxu0 0.0
      %1486 = vmatpush.msra.mxu0 0.0
      %1487 = vmatpush.msra.mxu0 0.0
      %1488 = vmatpush.msra.mxu0 0.0
      %1489 = vmatpush.msra.mxu0 0.0
      %1490 = vmatpush.msra.mxu0 0.0
      %1491 = vmatpush.msra.mxu0 0.0
      %1492 = vmatpush.msra.mxu0 0.0
      %1493 = vmatpush.msra.mxu0 %v1386
      %1494 = vmatmul.f32.gmra.mxu0 %v1476
      %v1495 = vpop.f32.mrf.mxu0
      %v1496 = vadd.f32 %v1433, %v1495
      %1497 = vdwg.mxu0
      %1498 = vmatpush.msra.mxu0 0.0
      %1499 = vmatpush.msra.mxu0 0.0
      %1500 = vmatpush.msra.mxu0 0.0
      %1501 = vmatpush.msra.mxu0 0.0
      %1502 = vmatpush.msra.mxu0 0.0
      %1503 = vmatpush.msra.mxu0 0.0
      %1504 = vmatpush.msra.mxu0 0.0
      %1505 = vmatpush.msra.mxu0 0.0
      %1506 = vmatpush.msra.mxu0 0.0
      %1507 = vmatpush.msra.mxu0 0.0
      %1508 = vmatpush.msra.mxu0 0.0
      %1509 = vmatpush.msra.mxu0 0.0
      %1510 = vmatpush.msra.mxu0 0.0
      %1511 = vmatpush.msra.mxu0 0.0
      %1512 = vmatpush.msra.mxu0 0.0
      %1513 = vmatpush.msra.mxu0 %v1387
      %1514 = vmatmul.f32.gmra.mxu0 %v1476
      %v1515 = vpop.f32.mrf.mxu0
      %v1516 = vadd.f32 %v1453, %v1515
      %1517 = vdwg.mxu0
      %1518 = vmatpush.msra.mxu0 0.0
      %1519 = vmatpush.msra.mxu0 0.0
      %1520 = vmatpush.msra.mxu0 0.0
      %1521 = vmatpush.msra.mxu0 0.0
      %1522 = vmatpush.msra.mxu0 0.0
      %1523 = vmatpush.msra.mxu0 0.0
      %1524 = vmatpush.msra.mxu0 0.0
      %1525 = vmatpush.msra.mxu0 0.0
      %1526 = vmatpush.msra.mxu0 0.0
      %1527 = vmatpush.msra.mxu0 0.0
      %1528 = vmatpush.msra.mxu0 0.0
      %1529 = vmatpush.msra.mxu0 0.0
      %1530 = vmatpush.msra.mxu0 0.0
      %1531 = vmatpush.msra.mxu0 0.0
      %1532 = vmatpush.msra.mxu0 0.0
      %1533 = vmatpush.msra.mxu0 %v1388
      %1534 = vmatmul.f32.gmra.mxu0 %v1476
      %v1535 = vpop.f32.mrf.mxu0
      %v1536 = vadd.f32 %v1473, %v1535
      %1537 = vdwg.mxu0
      %s1538 = scalar_lea.vmem %s3, 16
      %v1539 = vld [vmem:[%s1538] sm:$0xff]
      %1540 = vrot.lane.b32.xlu0 %v1386, 126
      %v1541 = vpop.permute.xlu0 %1540
      %1542 = vrot.lane.b32.xlu0 %v1387, 126
      %v1543 = vpop.permute.xlu0 %1542
      %1544 = vrot.lane.b32.xlu0 %v1388, 126
      %v1545 = vpop.permute.xlu0 %1544
      %1546 = vrot.lane.b32.xlu0 %v1389, 126
      %v1547 = vpop.permute.xlu0 %1546
      %v1548 = vsel %vm526, %v1541, %v1543
      %v1549 = vsel %vm526, %v1543, %v1545
      %v1550 = vsel %vm526, %v1545, %v1547
      %v1555 = vsel %vm1411, %v1539, 0
      %1557 = vmatpush.msra.mxu0 0.0
      %1558 = vmatpush.msra.mxu0 0.0
      %1559 = vmatpush.msra.mxu0 0.0
      %1560 = vmatpush.msra.mxu0 0.0
      %1561 = vmatpush.msra.mxu0 0.0
      %1562 = vmatpush.msra.mxu0 0.0
      %1563 = vmatpush.msra.mxu0 0.0
      %1564 = vmatpush.msra.mxu0 0.0
      %1565 = vmatpush.msra.mxu0 0.0
      %1566 = vmatpush.msra.mxu0 0.0
      %1567 = vmatpush.msra.mxu0 0.0
      %1568 = vmatpush.msra.mxu0 0.0
      %1569 = vmatpush.msra.mxu0 0.0
      %1570 = vmatpush.msra.mxu0 0.0
      %1571 = vmatpush.msra.mxu0 0.0
      %1572 = vmatpush.msra.mxu0 %v1548
      %1573 = vmatmul.f32.gmra.mxu0 %v1555
      %v1574 = vpop.f32.mrf.mxu0
      %v1575 = vadd.f32 0.0, %v1574
      %1576 = vdwg.mxu0
      %1577 = vmatpush.msra.mxu0 0.0
      %1578 = vmatpush.msra.mxu0 0.0
      %1579 = vmatpush.msra.mxu0 0.0
      %1580 = vmatpush.msra.mxu0 0.0
      %1581 = vmatpush.msra.mxu0 0.0
      %1582 = vmatpush.msra.mxu0 0.0
      %1583 = vmatpush.msra.mxu0 0.0
      %1584 = vmatpush.msra.mxu0 0.0
      %1585 = vmatpush.msra.mxu0 0.0
      %1586 = vmatpush.msra.mxu0 0.0
      %1587 = vmatpush.msra.mxu0 0.0
      %1588 = vmatpush.msra.mxu0 0.0
      %1589 = vmatpush.msra.mxu0 0.0
      %1590 = vmatpush.msra.mxu0 0.0
      %1591 = vmatpush.msra.mxu0 0.0
      %1592 = vmatpush.msra.mxu0 %v1549
      %1593 = vmatmul.f32.gmra.mxu0 %v1555
      %v1594 = vpop.f32.mrf.mxu0
      %v1595 = vadd.f32 0.0, %v1594
      %1596 = vdwg.mxu0
      %1597 = vmatpush.msra.mxu0 0.0
      %1598 = vmatpush.msra.mxu0 0.0
      %1599 = vmatpush.msra.mxu0 0.0
      %1600 = vmatpush.msra.mxu0 0.0
      %1601 = vmatpush.msra.mxu0 0.0
      %1602 = vmatpush.msra.mxu0 0.0
      %1603 = vmatpush.msra.mxu0 0.0
      %1604 = vmatpush.msra.mxu0 0.0
      %1605 = vmatpush.msra.mxu0 0.0
      %1606 = vmatpush.msra.mxu0 0.0
      %1607 = vmatpush.msra.mxu0 0.0
      %1608 = vmatpush.msra.mxu0 0.0
      %1609 = vmatpush.msra.mxu0 0.0
      %1610 = vmatpush.msra.mxu0 0.0
      %1611 = vmatpush.msra.mxu0 0.0
      %1612 = vmatpush.msra.mxu0 %v1550
      %1613 = vmatmul.f32.gmra.mxu0 %v1555
      %v1614 = vpop.f32.mrf.mxu0
      %v1615 = vadd.f32 0.0, %v1614
      %1616 = vdwg.mxu0
      %v1617 = vadd.f32 %v1496, %v1575
      %v1618 = vadd.f32 %v1516, %v1595
      %v1619 = vadd.f32 %v1536, %v1615
      %s1620 = scalar_lea.vmem %s3, 24
      %v1621 = vld [vmem:[%s1620] sm:$0xff]
      %1622 = vrot.lane.b32.xlu0 %v1386, 108
      %v1623 = vpop.permute.xlu0 %1622
      %1624 = vrot.lane.b32.xlu0 %v1387, 108
      %v1625 = vpop.permute.xlu0 %1624
      %1626 = vrot.lane.b32.xlu0 %v1388, 108
      %v1627 = vpop.permute.xlu0 %1626
      %1628 = vrot.lane.b32.xlu0 %v1389, 108
      %v1629 = vpop.permute.xlu0 %1628
      %v1630 = vsel %vm646, %v1623, %v1625
      %v1631 = vsel %vm646, %v1625, %v1627
      %v1632 = vsel %vm646, %v1627, %v1629
      %v1637 = vsel %vm1411, %v1621, 0
      %1639 = vmatpush.msra.mxu0 0.0
      %1640 = vmatpush.msra.mxu0 0.0
      %1641 = vmatpush.msra.mxu0 0.0
      %1642 = vmatpush.msra.mxu0 0.0
      %1643 = vmatpush.msra.mxu0 0.0
      %1644 = vmatpush.msra.mxu0 0.0
      %1645 = vmatpush.msra.mxu0 0.0
      %1646 = vmatpush.msra.mxu0 0.0
      %1647 = vmatpush.msra.mxu0 0.0
      %1648 = vmatpush.msra.mxu0 0.0
      %1649 = vmatpush.msra.mxu0 0.0
      %1650 = vmatpush.msra.mxu0 0.0
      %1651 = vmatpush.msra.mxu0 0.0
      %1652 = vmatpush.msra.mxu0 0.0
      %1653 = vmatpush.msra.mxu0 0.0
      %1654 = vmatpush.msra.mxu0 %v1630
      %1655 = vmatmul.f32.gmra.mxu0 %v1637
      %v1656 = vpop.f32.mrf.mxu0
      %v1657 = vadd.f32 0.0, %v1656
      %1658 = vdwg.mxu0
      %1659 = vmatpush.msra.mxu0 0.0
      %1660 = vmatpush.msra.mxu0 0.0
      %1661 = vmatpush.msra.mxu0 0.0
      %1662 = vmatpush.msra.mxu0 0.0
      %1663 = vmatpush.msra.mxu0 0.0
      %1664 = vmatpush.msra.mxu0 0.0
      %1665 = vmatpush.msra.mxu0 0.0
      %1666 = vmatpush.msra.mxu0 0.0
      %1667 = vmatpush.msra.mxu0 0.0
      %1668 = vmatpush.msra.mxu0 0.0
      %1669 = vmatpush.msra.mxu0 0.0
      %1670 = vmatpush.msra.mxu0 0.0
      %1671 = vmatpush.msra.mxu0 0.0
      %1672 = vmatpush.msra.mxu0 0.0
      %1673 = vmatpush.msra.mxu0 0.0
      %1674 = vmatpush.msra.mxu0 %v1631
      %1675 = vmatmul.f32.gmra.mxu0 %v1637
      %v1676 = vpop.f32.mrf.mxu0
      %v1677 = vadd.f32 0.0, %v1676
      %1678 = vdwg.mxu0
      %1679 = vmatpush.msra.mxu0 0.0
      %1680 = vmatpush.msra.mxu0 0.0
      %1681 = vmatpush.msra.mxu0 0.0
      %1682 = vmatpush.msra.mxu0 0.0
      %1683 = vmatpush.msra.mxu0 0.0
      %1684 = vmatpush.msra.mxu0 0.0
      %1685 = vmatpush.msra.mxu0 0.0
      %1686 = vmatpush.msra.mxu0 0.0
      %1687 = vmatpush.msra.mxu0 0.0
      %1688 = vmatpush.msra.mxu0 0.0
      %1689 = vmatpush.msra.mxu0 0.0
      %1690 = vmatpush.msra.mxu0 0.0
      %1691 = vmatpush.msra.mxu0 0.0
      %1692 = vmatpush.msra.mxu0 0.0
      %1693 = vmatpush.msra.mxu0 0.0
      %1694 = vmatpush.msra.mxu0 %v1632
      %1695 = vmatmul.f32.gmra.mxu0 %v1637
      %v1696 = vpop.f32.mrf.mxu0
      %v1697 = vadd.f32 0.0, %v1696
      %1698 = vdwg.mxu0
      %v1699 = vadd.f32 %v1617, %v1657
      %v1700 = vadd.f32 %v1618, %v1677
      %v1701 = vadd.f32 %v1619, %v1697
      %s1702 = scalar_lea.vmem %s3, 32
      %v1703 = vld [vmem:[%s1702] sm:$0xff]
      %1704 = vrot.lane.b32.xlu0 %v1386, 107
      %v1705 = vpop.permute.xlu0 %1704
      %1706 = vrot.lane.b32.xlu0 %v1387, 107
      %v1707 = vpop.permute.xlu0 %1706
      %1708 = vrot.lane.b32.xlu0 %v1388, 107
      %v1709 = vpop.permute.xlu0 %1708
      %1710 = vrot.lane.b32.xlu0 %v1389, 107
      %v1711 = vpop.permute.xlu0 %1710
      %v1712 = vsel %vm766, %v1705, %v1707
      %v1713 = vsel %vm766, %v1707, %v1709
      %v1714 = vsel %vm766, %v1709, %v1711
      %v1719 = vsel %vm1411, %v1703, 0
      %1721 = vmatpush.msra.mxu0 0.0
      %1722 = vmatpush.msra.mxu0 0.0
      %1723 = vmatpush.msra.mxu0 0.0
      %1724 = vmatpush.msra.mxu0 0.0
      %1725 = vmatpush.msra.mxu0 0.0
      %1726 = vmatpush.msra.mxu0 0.0
      %1727 = vmatpush.msra.mxu0 0.0
      %1728 = vmatpush.msra.mxu0 0.0
      %1729 = vmatpush.msra.mxu0 0.0
      %1730 = vmatpush.msra.mxu0 0.0
      %1731 = vmatpush.msra.mxu0 0.0
      %1732 = vmatpush.msra.mxu0 0.0
      %1733 = vmatpush.msra.mxu0 0.0
      %1734 = vmatpush.msra.mxu0 0.0
      %1735 = vmatpush.msra.mxu0 0.0
      %1736 = vmatpush.msra.mxu0 %v1712
      %1737 = vmatmul.f32.gmra.mxu0 %v1719
      %v1738 = vpop.f32.mrf.mxu0
      %v1739 = vadd.f32 0.0, %v1738
      %1740 = vdwg.mxu0
      %1741 = vmatpush.msra.mxu0 0.0
      %1742 = vmatpush.msra.mxu0 0.0
      %1743 = vmatpush.msra.mxu0 0.0
      %1744 = vmatpush.msra.mxu0 0.0
      %1745 = vmatpush.msra.mxu0 0.0
      %1746 = vmatpush.msra.mxu0 0.0
      %1747 = vmatpush.msra.mxu0 0.0
      %1748 = vmatpush.msra.mxu0 0.0
      %1749 = vmatpush.msra.mxu0 0.0
      %1750 = vmatpush.msra.mxu0 0.0
      %1751 = vmatpush.msra.mxu0 0.0
      %1752 = vmatpush.msra.mxu0 0.0
      %1753 = vmatpush.msra.mxu0 0.0
      %1754 = vmatpush.msra.mxu0 0.0
      %1755 = vmatpush.msra.mxu0 0.0
      %1756 = vmatpush.msra.mxu0 %v1713
      %1757 = vmatmul.f32.gmra.mxu0 %v1719
      %v1758 = vpop.f32.mrf.mxu0
      %v1759 = vadd.f32 0.0, %v1758
      %1760 = vdwg.mxu0
      %1761 = vmatpush.msra.mxu0 0.0
      %1762 = vmatpush.msra.mxu0 0.0
      %1763 = vmatpush.msra.mxu0 0.0
      %1764 = vmatpush.msra.mxu0 0.0
      %1765 = vmatpush.msra.mxu0 0.0
      %1766 = vmatpush.msra.mxu0 0.0
      %1767 = vmatpush.msra.mxu0 0.0
      %1768 = vmatpush.msra.mxu0 0.0
      %1769 = vmatpush.msra.mxu0 0.0
      %1770 = vmatpush.msra.mxu0 0.0
      %1771 = vmatpush.msra.mxu0 0.0
      %1772 = vmatpush.msra.mxu0 0.0
      %1773 = vmatpush.msra.mxu0 0.0
      %1774 = vmatpush.msra.mxu0 0.0
      %1775 = vmatpush.msra.mxu0 0.0
      %1776 = vmatpush.msra.mxu0 %v1714
      %1777 = vmatmul.f32.gmra.mxu0 %v1719
      %v1778 = vpop.f32.mrf.mxu0
      %v1779 = vadd.f32 0.0, %v1778
      %1780 = vdwg.mxu0
      %v1781 = vadd.f32 %v1699, %v1739
      %v1782 = vadd.f32 %v1700, %v1759
      %v1783 = vadd.f32 %v1701, %v1779
      %s1784 = scalar_lea.vmem %s3, 40
      %v1785 = vld [vmem:[%s1784] sm:$0xff]
      %1786 = vrot.lane.b32.xlu0 %v1386, 106
      %v1787 = vpop.permute.xlu0 %1786
      %1788 = vrot.lane.b32.xlu0 %v1387, 106
      %v1789 = vpop.permute.xlu0 %1788
      %1790 = vrot.lane.b32.xlu0 %v1388, 106
      %v1791 = vpop.permute.xlu0 %1790
      %1792 = vrot.lane.b32.xlu0 %v1389, 106
      %v1793 = vpop.permute.xlu0 %1792
      %v1794 = vsel %vm886, %v1787, %v1789
      %v1795 = vsel %vm886, %v1789, %v1791
      %v1796 = vsel %vm886, %v1791, %v1793
      %v1801 = vsel %vm1411, %v1785, 0
      %1803 = vmatpush.msra.mxu0 0.0
      %1804 = vmatpush.msra.mxu0 0.0
      %1805 = vmatpush.msra.mxu0 0.0
      %1806 = vmatpush.msra.mxu0 0.0
      %1807 = vmatpush.msra.mxu0 0.0
      %1808 = vmatpush.msra.mxu0 0.0
      %1809 = vmatpush.msra.mxu0 0.0
      %1810 = vmatpush.msra.mxu0 0.0
      %1811 = vmatpush.msra.mxu0 0.0
      %1812 = vmatpush.msra.mxu0 0.0
      %1813 = vmatpush.msra.mxu0 0.0
      %1814 = vmatpush.msra.mxu0 0.0
      %1815 = vmatpush.msra.mxu0 0.0
      %1816 = vmatpush.msra.mxu0 0.0
      %1817 = vmatpush.msra.mxu0 0.0
      %1818 = vmatpush.msra.mxu0 %v1794
      %1819 = vmatmul.f32.gmra.mxu0 %v1801
      %v1820 = vpop.f32.mrf.mxu0
      %v1821 = vadd.f32 0.0, %v1820
      %1822 = vdwg.mxu0
      %1823 = vmatpush.msra.mxu0 0.0
      %1824 = vmatpush.msra.mxu0 0.0
      %1825 = vmatpush.msra.mxu0 0.0
      %1826 = vmatpush.msra.mxu0 0.0
      %1827 = vmatpush.msra.mxu0 0.0
      %1828 = vmatpush.msra.mxu0 0.0
      %1829 = vmatpush.msra.mxu0 0.0
      %1830 = vmatpush.msra.mxu0 0.0
      %1831 = vmatpush.msra.mxu0 0.0
      %1832 = vmatpush.msra.mxu0 0.0
      %1833 = vmatpush.msra.mxu0 0.0
      %1834 = vmatpush.msra.mxu0 0.0
      %1835 = vmatpush.msra.mxu0 0.0
      %1836 = vmatpush.msra.mxu0 0.0
      %1837 = vmatpush.msra.mxu0 0.0
      %1838 = vmatpush.msra.mxu0 %v1795
      %1839 = vmatmul.f32.gmra.mxu0 %v1801
      %v1840 = vpop.f32.mrf.mxu0
      %v1841 = vadd.f32 0.0, %v1840
      %1842 = vdwg.mxu0
      %1843 = vmatpush.msra.mxu0 0.0
      %1844 = vmatpush.msra.mxu0 0.0
      %1845 = vmatpush.msra.mxu0 0.0
      %1846 = vmatpush.msra.mxu0 0.0
      %1847 = vmatpush.msra.mxu0 0.0
      %1848 = vmatpush.msra.mxu0 0.0
      %1849 = vmatpush.msra.mxu0 0.0
      %1850 = vmatpush.msra.mxu0 0.0
      %1851 = vmatpush.msra.mxu0 0.0
      %1852 = vmatpush.msra.mxu0 0.0
      %1853 = vmatpush.msra.mxu0 0.0
      %1854 = vmatpush.msra.mxu0 0.0
      %1855 = vmatpush.msra.mxu0 0.0
      %1856 = vmatpush.msra.mxu0 0.0
      %1857 = vmatpush.msra.mxu0 0.0
      %1858 = vmatpush.msra.mxu0 %v1796
      %1859 = vmatmul.f32.gmra.mxu0 %v1801
      %v1860 = vpop.f32.mrf.mxu0
      %v1861 = vadd.f32 0.0, %v1860
      %1862 = vdwg.mxu0
      %v1863 = vadd.f32 %v1781, %v1821
      %v1864 = vadd.f32 %v1782, %v1841
      %v1865 = vadd.f32 %v1783, %v1861
      %s1866 = scalar_lea.vmem %s3, 48
      %v1867 = vld [vmem:[%s1866] sm:$0xff]
      %1868 = vrot.lane.b32.xlu0 %v1386, 88
      %v1869 = vpop.permute.xlu0 %1868
      %1870 = vrot.lane.b32.xlu0 %v1387, 88
      %v1871 = vpop.permute.xlu0 %1870
      %1872 = vrot.lane.b32.xlu0 %v1388, 88
      %v1873 = vpop.permute.xlu0 %1872
      %1874 = vrot.lane.b32.xlu0 %v1389, 88
      %v1875 = vpop.permute.xlu0 %1874
      %v1876 = vsel %vm1006, %v1869, %v1871
      %v1877 = vsel %vm1006, %v1871, %v1873
      %v1878 = vsel %vm1006, %v1873, %v1875
      %v1883 = vsel %vm1411, %v1867, 0
      %1885 = vmatpush.msra.mxu0 0.0
      %1886 = vmatpush.msra.mxu0 0.0
      %1887 = vmatpush.msra.mxu0 0.0
      %1888 = vmatpush.msra.mxu0 0.0
      %1889 = vmatpush.msra.mxu0 0.0
      %1890 = vmatpush.msra.mxu0 0.0
      %1891 = vmatpush.msra.mxu0 0.0
      %1892 = vmatpush.msra.mxu0 0.0
      %1893 = vmatpush.msra.mxu0 0.0
      %1894 = vmatpush.msra.mxu0 0.0
      %1895 = vmatpush.msra.mxu0 0.0
      %1896 = vmatpush.msra.mxu0 0.0
      %1897 = vmatpush.msra.mxu0 0.0
      %1898 = vmatpush.msra.mxu0 0.0
      %1899 = vmatpush.msra.mxu0 0.0
      %1900 = vmatpush.msra.mxu0 %v1876
      %1901 = vmatmul.f32.gmra.mxu0 %v1883
      %v1902 = vpop.f32.mrf.mxu0
      %v1903 = vadd.f32 0.0, %v1902
      %1904 = vdwg.mxu0
      %1905 = vmatpush.msra.mxu0 0.0
      %1906 = vmatpush.msra.mxu0 0.0
      %1907 = vmatpush.msra.mxu0 0.0
      %1908 = vmatpush.msra.mxu0 0.0
      %1909 = vmatpush.msra.mxu0 0.0
      %1910 = vmatpush.msra.mxu0 0.0
      %1911 = vmatpush.msra.mxu0 0.0
      %1912 = vmatpush.msra.mxu0 0.0
      %1913 = vmatpush.msra.mxu0 0.0
      %1914 = vmatpush.msra.mxu0 0.0
      %1915 = vmatpush.msra.mxu0 0.0
      %1916 = vmatpush.msra.mxu0 0.0
      %1917 = vmatpush.msra.mxu0 0.0
      %1918 = vmatpush.msra.mxu0 0.0
      %1919 = vmatpush.msra.mxu0 0.0
      %1920 = vmatpush.msra.mxu0 %v1877
      %1921 = vmatmul.f32.gmra.mxu0 %v1883
      %v1922 = vpop.f32.mrf.mxu0
      %v1923 = vadd.f32 0.0, %v1922
      %1924 = vdwg.mxu0
      %1925 = vmatpush.msra.mxu0 0.0
      %1926 = vmatpush.msra.mxu0 0.0
      %1927 = vmatpush.msra.mxu0 0.0
      %1928 = vmatpush.msra.mxu0 0.0
      %1929 = vmatpush.msra.mxu0 0.0
      %1930 = vmatpush.msra.mxu0 0.0
      %1931 = vmatpush.msra.mxu0 0.0
      %1932 = vmatpush.msra.mxu0 0.0
      %1933 = vmatpush.msra.mxu0 0.0
      %1934 = vmatpush.msra.mxu0 0.0
      %1935 = vmatpush.msra.mxu0 0.0
      %1936 = vmatpush.msra.mxu0 0.0
      %1937 = vmatpush.msra.mxu0 0.0
      %1938 = vmatpush.msra.mxu0 0.0
      %1939 = vmatpush.msra.mxu0 0.0
      %1940 = vmatpush.msra.mxu0 %v1878
      %1941 = vmatmul.f32.gmra.mxu0 %v1883
      %v1942 = vpop.f32.mrf.mxu0
      %v1943 = vadd.f32 0.0, %v1942
      %1944 = vdwg.mxu0
      %v1945 = vadd.f32 %v1863, %v1903
      %v1946 = vadd.f32 %v1864, %v1923
      %v1947 = vadd.f32 %v1865, %v1943
      %s1948 = scalar_lea.vmem %s3, 56
      %v1949 = vld [vmem:[%s1948] sm:$0xff]
      %1950 = vrot.lane.b32.xlu0 %v1386, 87
      %v1951 = vpop.permute.xlu0 %1950
      %1952 = vrot.lane.b32.xlu0 %v1387, 87
      %v1953 = vpop.permute.xlu0 %1952
      %1954 = vrot.lane.b32.xlu0 %v1388, 87
      %v1955 = vpop.permute.xlu0 %1954
      %1956 = vrot.lane.b32.xlu0 %v1389, 87
      %v1957 = vpop.permute.xlu0 %1956
      %v1958 = vsel %vm1126, %v1951, %v1953
      %v1959 = vsel %vm1126, %v1953, %v1955
      %v1960 = vsel %vm1126, %v1955, %v1957
      %v1965 = vsel %vm1411, %v1949, 0
      %1967 = vmatpush.msra.mxu0 0.0
      %1968 = vmatpush.msra.mxu0 0.0
      %1969 = vmatpush.msra.mxu0 0.0
      %1970 = vmatpush.msra.mxu0 0.0
      %1971 = vmatpush.msra.mxu0 0.0
      %1972 = vmatpush.msra.mxu0 0.0
      %1973 = vmatpush.msra.mxu0 0.0
      %1974 = vmatpush.msra.mxu0 0.0
      %1975 = vmatpush.msra.mxu0 0.0
      %1976 = vmatpush.msra.mxu0 0.0
      %1977 = vmatpush.msra.mxu0 0.0
      %1978 = vmatpush.msra.mxu0 0.0
      %1979 = vmatpush.msra.mxu0 0.0
      %1980 = vmatpush.msra.mxu0 0.0
      %1981 = vmatpush.msra.mxu0 0.0
      %1982 = vmatpush.msra.mxu0 %v1958
      %1983 = vmatmul.f32.gmra.mxu0 %v1965
      %v1984 = vpop.f32.mrf.mxu0
      %v1985 = vadd.f32 0.0, %v1984
      %1986 = vdwg.mxu0
      %1987 = vmatpush.msra.mxu0 0.0
      %1988 = vmatpush.msra.mxu0 0.0
      %1989 = vmatpush.msra.mxu0 0.0
      %1990 = vmatpush.msra.mxu0 0.0
      %1991 = vmatpush.msra.mxu0 0.0
      %1992 = vmatpush.msra.mxu0 0.0
      %1993 = vmatpush.msra.mxu0 0.0
      %1994 = vmatpush.msra.mxu0 0.0
      %1995 = vmatpush.msra.mxu0 0.0
      %1996 = vmatpush.msra.mxu0 0.0
      %1997 = vmatpush.msra.mxu0 0.0
      %1998 = vmatpush.msra.mxu0 0.0
      %1999 = vmatpush.msra.mxu0 0.0
      %2000 = vmatpush.msra.mxu0 0.0
      %2001 = vmatpush.msra.mxu0 0.0
      %2002 = vmatpush.msra.mxu0 %v1959
      %2003 = vmatmul.f32.gmra.mxu0 %v1965
      %v2004 = vpop.f32.mrf.mxu0
      %v2005 = vadd.f32 0.0, %v2004
      %2006 = vdwg.mxu0
      %2007 = vmatpush.msra.mxu0 0.0
      %2008 = vmatpush.msra.mxu0 0.0
      %2009 = vmatpush.msra.mxu0 0.0
      %2010 = vmatpush.msra.mxu0 0.0
      %2011 = vmatpush.msra.mxu0 0.0
      %2012 = vmatpush.msra.mxu0 0.0
      %2013 = vmatpush.msra.mxu0 0.0
      %2014 = vmatpush.msra.mxu0 0.0
      %2015 = vmatpush.msra.mxu0 0.0
      %2016 = vmatpush.msra.mxu0 0.0
      %2017 = vmatpush.msra.mxu0 0.0
      %2018 = vmatpush.msra.mxu0 0.0
      %2019 = vmatpush.msra.mxu0 0.0
      %2020 = vmatpush.msra.mxu0 0.0
      %2021 = vmatpush.msra.mxu0 0.0
      %2022 = vmatpush.msra.mxu0 %v1960
      %2023 = vmatmul.f32.gmra.mxu0 %v1965
      %v2024 = vpop.f32.mrf.mxu0
      %v2025 = vadd.f32 0.0, %v2024
      %2026 = vdwg.mxu0
      %v2027 = vadd.f32 %v1945, %v1985
      %v2028 = vadd.f32 %v1946, %v2005
      %v2029 = vadd.f32 %v1947, %v2025
      %s2030 = scalar_lea.vmem %s3, 64
      %v2031 = vld [vmem:[%s2030] sm:$0xff]
      %2032 = vrot.lane.b32.xlu0 %v1386, 86
      %v2033 = vpop.permute.xlu0 %2032
      %2034 = vrot.lane.b32.xlu0 %v1387, 86
      %v2035 = vpop.permute.xlu0 %2034
      %2036 = vrot.lane.b32.xlu0 %v1388, 86
      %v2037 = vpop.permute.xlu0 %2036
      %2038 = vrot.lane.b32.xlu0 %v1389, 86
      %v2039 = vpop.permute.xlu0 %2038
      %v2040 = vsel %vm1246, %v2033, %v2035
      %v2041 = vsel %vm1246, %v2035, %v2037
      %v2042 = vsel %vm1246, %v2037, %v2039
      %v2047 = vsel %vm1411, %v2031, 0
      %2049 = vmatpush.msra.mxu0 0.0
      %2050 = vmatpush.msra.mxu0 0.0
      %2051 = vmatpush.msra.mxu0 0.0
      %2052 = vmatpush.msra.mxu0 0.0
      %2053 = vmatpush.msra.mxu0 0.0
      %2054 = vmatpush.msra.mxu0 0.0
      %2055 = vmatpush.msra.mxu0 0.0
      %2056 = vmatpush.msra.mxu0 0.0
      %2057 = vmatpush.msra.mxu0 0.0
      %2058 = vmatpush.msra.mxu0 0.0
      %2059 = vmatpush.msra.mxu0 0.0
      %2060 = vmatpush.msra.mxu0 0.0
      %2061 = vmatpush.msra.mxu0 0.0
      %2062 = vmatpush.msra.mxu0 0.0
      %2063 = vmatpush.msra.mxu0 0.0
      %2064 = vmatpush.msra.mxu0 %v2040
      %2065 = vmatmul.f32.gmra.mxu0 %v2047
      %v2066 = vpop.f32.mrf.mxu0
      %v2067 = vadd.f32 0.0, %v2066
      %2068 = vdwg.mxu0
      %2069 = vmatpush.msra.mxu0 0.0
      %2070 = vmatpush.msra.mxu0 0.0
      %2071 = vmatpush.msra.mxu0 0.0
      %2072 = vmatpush.msra.mxu0 0.0
      %2073 = vmatpush.msra.mxu0 0.0
      %2074 = vmatpush.msra.mxu0 0.0
      %2075 = vmatpush.msra.mxu0 0.0
      %2076 = vmatpush.msra.mxu0 0.0
      %2077 = vmatpush.msra.mxu0 0.0
      %2078 = vmatpush.msra.mxu0 0.0
      %2079 = vmatpush.msra.mxu0 0.0
      %2080 = vmatpush.msra.mxu0 0.0
      %2081 = vmatpush.msra.mxu0 0.0
      %2082 = vmatpush.msra.mxu0 0.0
      %2083 = vmatpush.msra.mxu0 0.0
      %2084 = vmatpush.msra.mxu0 %v2041
      %2085 = vmatmul.f32.gmra.mxu0 %v2047
      %v2086 = vpop.f32.mrf.mxu0
      %v2087 = vadd.f32 0.0, %v2086
      %2088 = vdwg.mxu0
      %2089 = vmatpush.msra.mxu0 0.0
      %2090 = vmatpush.msra.mxu0 0.0
      %2091 = vmatpush.msra.mxu0 0.0
      %2092 = vmatpush.msra.mxu0 0.0
      %2093 = vmatpush.msra.mxu0 0.0
      %2094 = vmatpush.msra.mxu0 0.0
      %2095 = vmatpush.msra.mxu0 0.0
      %2096 = vmatpush.msra.mxu0 0.0
      %2097 = vmatpush.msra.mxu0 0.0
      %2098 = vmatpush.msra.mxu0 0.0
      %2099 = vmatpush.msra.mxu0 0.0
      %2100 = vmatpush.msra.mxu0 0.0
      %2101 = vmatpush.msra.mxu0 0.0
      %2102 = vmatpush.msra.mxu0 0.0
      %2103 = vmatpush.msra.mxu0 0.0
      %2104 = vmatpush.msra.mxu0 %v2042
      %2105 = vmatmul.f32.gmra.mxu0 %v2047
      %v2106 = vpop.f32.mrf.mxu0
      %v2107 = vadd.f32 0.0, %v2106
      %2108 = vdwg.mxu0
      %v2109 = vadd.f32 %v2027, %v2067
      %v2110 = vadd.f32 %v2028, %v2087
      %v2111 = vadd.f32 %v2029, %v2107
      %v2112 = vld [vmem:[%s4] sm:$0xff]
      %2114 = vset.pattern.permute.xlu0 0
      %2115 = vperm.xlu0 %2114, %v2112
      %v2116 = vpop.permute.xlu0 %2115
      %v2118 = vadd.f32 %v2109, %v2116
      %v2119 = vadd.f32 %v2110, %v2116
      %v2120 = vadd.f32 %v2111, %v2116
      %v2121 = vmul.f32 %v2118, 0.2
      %v2122 = vmul.f32 %v2119, 0.2
      %v2123 = vmul.f32 %v2120, 0.2
      %v2124 = vmax.f32 %v2118, %v2121
      %v2125 = vmax.f32 %v2119, %v2122
      %v2126 = vmax.f32 %v2120, %v2123
      %2127 = vst [vmem:[%s287] sm:$0xff] %v2124
      %2128 = vst [vmem:[%s287 + $0x8] sm:$0xff] %v2125
      %2129 = vst [vmem:[%s287 + $0x10] sm:$0xff] %v2126
      %p2130 = scmp.lt.s32.totalorder %s21, 1
      %s2131 = scalar_select %p2130, %s21, 1
      %p2132 = scmp.lt.s32.totalorder %s22, 0
      %s2133 = scalar_select %p2132, %s22, 0
      %s2134 = smul.addr %s2133, 3
      %s2135 = smul.addr %s2131, 3
      %s2136 = sadd.s32 %s2134, %s2135
      %s2137 = smul.addr %s2136, 8
      %s2138 = scalar_lea.vmem %s6, %s2137
      // Predicated region
      $region45: #{block_forward.1} parent=43 // pred_check
        %p2139 = pneg %p182
      $region46: #{block_forward.1} parent=43 // pred_check_branch
        %2141 = sbr.rel (%p2139) target = $region48
      $region47: #{block_forward.1} parent=43 // pred_region
        _
      $region48: #{block_forward.1} parent=43 // pred_fallthru
        _
    $region44: #{block_forward.1} parent=5 // pred_fallthru
      _
    %p2142 = scmp.le.s32.totalorder 2, %s12
    // Predicated region
    $region49: #{block_forward.1} parent=5 // pred_check
      %p2143 = pneg %p2142
    $region50: #{block_forward.1} parent=5 // pred_check_branch
      %2145 = sbr.rel (%p2143) target = $region52
    $region51: #{block_forward.1} parent=5 // pred_region
      %s2146 = ssub.s32 %s12, 2
      // Predicated region
      $region53: #{block_forward.1} parent=51 // pred_check
        %p2147 = pneg %p188
      $region54: #{block_forward.1} parent=51 // pred_check_branch
        %2149 = sbr.rel (%p2147) target = $region56
      $region55: #{block_forward.1} parent=51 // pred_region
        %p2150 = scmp.lt.s32.totalorder %s23, 1
        %s2151 = scalar_select %p2150, %s23, 1
        %p2152 = scmp.lt.s32.totalorder %s24, 0
        %s2153 = scalar_select %p2152, %s24, 0
        %s2154 = smul.addr %s2153, 3
        %s2155 = smul.addr %s2151, 3
        %s2156 = sadd.s32 %s2154, %s2155
        %s2157 = smul.addr %s2156, 8
        %s2158 = scalar_lea.vmem %s6, %s2157
      $region56: #{block_forward.1} parent=51 // pred_fallthru
        _
    $region52: #{block_forward.1} parent=5 // pred_fallthru
      _
  $region6: #{block_forward.1} parent=0 // loop_footer
    %s16 = sadd.s32 1, %s12
  $region7: #{block_forward.1} parent=0 // loop_footer_branch
    %11 = sbr.rel target = $region3
  $region8: #{block_forward.1} parent=0 // loop_exit
    _

</llo_original>
